<compile_context>
chip_gen: v6e
topology: v6e:2x2x1
jax: 0.10.0
libtpu: 0.0.40
codegen_flags: <defaults>
</compile_context>

<pallas_src>
import functools
import math

import numpy as np
import jax
import jax.numpy as jnp
from jax.experimental import pallas as pl
from jax.experimental.pallas import tpu as pltpu


def _attn_pool_kernel(x_ref, posr_kv_ref, pos0q_ref, pos0kv_ref, wq_ref,
                      wkv_ref, wc_ref, bc_ref, esum_ref, eexp_ref, o_ref,
                      *, hw_valid):
    # x_ref     : (B, HWp, C) bf16 token-major patch tokens (zero padded rows)
    # posr_kv   : (HWp, 2C) f32   posr @ [Wk|Wv]   (pad rows zero)
    # pos0q     : (1, C)    f32   pos0 @ (Wq*scale)
    # pos0kv    : (1, 2C)   f32   pos0 @ [Wk|Wv]
    # wq_ref    : (C, C)    bf16  Wq^T with 1/sqrt(head_dim) folded in
    # wkv_ref   : (C, 2C)   bf16  [Wk^T | Wv^T] fused
    # wc_ref    : (C, O)    bf16, bc_ref: (1, O) f32
    # esum_ref  : (C, H) 0/1 head-segment matrix; eexp_ref = esum^T (H, C)
    # o_ref     : (1, B, O)
    B, HWp, C = x_ref.shape
    H = esum_ref.shape[1]
    inv_hw = 1.0 / float(hw_valid)

    x_bf = x_ref[...]                                           # (B, HWp, C) bf16

    # One fused k/v projection over all B*HWp patch-token rows (bf16 MXU,
    # f32 accumulation).  HWp % 8 == 0, so the reshape is a free view.
    kv_p = jnp.dot(x_bf.reshape(B * HWp, C), wkv_ref[...],
                   preferred_element_type=jnp.float32).reshape(B, HWp, 2 * C)

    # Mean/query token (== token 0 of the PyTorch module) via linearity:
    # mean(x) @ Wkv == mean(x @ Wkv); pad rows are zero so sum/HW is exact.
    mean_tok = jnp.sum(x_bf.astype(jnp.float32), axis=1) * inv_hw         # (B, C)
    kv_m = jnp.sum(kv_p, axis=1) * inv_hw + pos0kv_ref[...]               # (B, 2C)

    # Positional-embedding contribution was projected on the host (f32) and is
    # added after the matmul (linearity).
    kv_p = kv_p + posr_kv_ref[...]                                        # (B, HWp, 2C)

    # Query projection for the mean token (scale folded into Wq; no q/k/v bias
    # because the module passes in_proj_bias=None).
    q = jnp.dot(mean_tok.astype(jnp.bfloat16), wq_ref[...],
                preferred_element_type=jnp.float32) + pos0q_ref[...]      # (B, C)

    k_p = kv_p[:, :, :C]
    v_p = kv_p[:, :, C:]
    k_m = kv_m[:, :C]
    v_m = kv_m[:, C:]

    esum = esum_ref[...]                                        # (C, H)
    eexp = eexp_ref[...]                                        # (H, C)

    # Per-head logits via a segmented-sum matmul on the MXU (no per-head loop).
    qk_p = k_p * q[:, None, :]                                            # (B, HWp, C)
    logit_p = jnp.dot(qk_p.reshape(B * HWp, C), esum,
                      preferred_element_type=jnp.float32).reshape(B, HWp, H)
    logit_m = jnp.dot(q * k_m, esum, preferred_element_type=jnp.float32)  # (B, H)

    if HWp != hw_valid:
        # Mask the zero-padded keys out of the softmax.
        valid = jax.lax.broadcasted_iota(jnp.int32, (1, HWp, 1), 1) < hw_valid
        logit_p = jnp.where(valid, logit_p, -1e30)

    # Softmax over all S = HW + 1 keys (mean token handled separately; softmax
    # is order invariant so this matches prepending it).
    mx = jnp.maximum(jnp.max(logit_p, axis=1), logit_m)                   # (B, H)
    p_p = jnp.exp(logit_p - mx[:, None, :])                               # (B, HWp, H)
    p_m = jnp.exp(logit_m - mx)                                           # (B, H)
    den = jnp.sum(p_p, axis=1) + p_m                                      # (B, H)

    # Weighted sum of v: expand head weights back to channel width (MXU),
    # then one VPU multiply + sublane reduce.
    pexp_p = jnp.dot(p_p.reshape(B * HWp, H), eexp,
                     preferred_element_type=jnp.float32).reshape(B, HWp, C)
    ctx = jnp.sum(pexp_p * v_p, axis=1)                                   # (B, C)
    ctx = ctx + jnp.dot(p_m, eexp, preferred_element_type=jnp.float32) * v_m
    inv_den = jnp.dot(pl.reciprocal(den, approx=True), eexp,
                      preferred_element_type=jnp.float32)                 # (B, C)
    ctx = ctx * inv_den

    # Output projection (context_proj) with bias.
    out = jnp.dot(ctx.astype(jnp.bfloat16), wc_ref[...],
                  preferred_element_type=jnp.float32) + bc_ref[...]       # (B, O)
    o_ref[...] = out[None].astype(o_ref.dtype)


def _pick_block_batch(n, hw_pad):
    # ~256 token rows per fused k/v MXU pass (safe for v7x's 64 MiB VMEM;
    # pass block_batch explicitly for ~512 rows on v6e).
    b = max(1, int(round(256.0 / float(hw_pad))))
    return min(b, n)


def attention_pool2d(x_nchw, pos, wq_t, wk_t, wv_t, wc_t, bc, num_heads,
                     block_batch=None):
    N, C, H, W = x_nchw.shape
    HW = H * W
    S = HW + 1
    O = wc_t.shape[1]
    head_dim = C // num_heads
    assert head_dim * num_heads == C
    assert pos.shape == (S, C)

    HWp = ((HW + 7) // 8) * 8                    # sublane-aligned token count
    B = block_batch if block_batch is not None else _pick_block_batch(N, HWp)
    G = -(-N // B)                               # grid steps (ragged N is padded)
    N_pad = G * B

    # ---- host-side parameter prep (one-off, data independent) ----
    f32 = jnp.float32
    bf16 = jnp.bfloat16
    scale = 1.0 / math.sqrt(head_dim)
    wq_s = wq_t.astype(f32) * scale                              # fold q scaling
    wkv = jnp.concatenate([wk_t, wv_t], axis=1).astype(f32)      # (C, 2C)
    pos0 = pos[0:1].astype(f32)                                  # (1, C)
    posr = pos[1:].astype(f32)                                   # (HW, C)
    # Linearity: project the positional embedding once on the host (f32) and
    # add it after the in-kernel matmuls.
    posr_kv = posr @ wkv                                         # (HW, 2C)
    pos0_kv = pos0 @ wkv                                         # (1, 2C)
    pos0_q = pos0 @ wq_s                                         # (1, C)
    if HWp != HW:
        posr_kv = jnp.pad(posr_kv, ((0, HWp - HW), (0, 0)))

    wq_bf = wq_s.astype(bf16)
    wkv_bf = wkv.astype(bf16)
    wc_bf = wc_t.astype(bf16)
    bc2 = bc.reshape(1, O).astype(f32)

    head_ids = np.arange(C) // head_dim
    esum_np = (head_ids[:, None] == np.arange(num_heads)[None, :]).astype(np.float32)
    esum = jnp.asarray(esum_np)                                  # (C, H)
    eexp = jnp.asarray(np.ascontiguousarray(esum_np.T))          # (H, C)

    # Token-major activations, zero-padded to (N_pad, HWp, C), bf16 for the MXU.
    x_tok = jnp.transpose(x_nchw.reshape(N, C, HW), (0, 2, 1))
    x_tok = jnp.pad(x_tok, ((0, N_pad - N), (0, HWp - HW), (0, 0)))
    x_tok = x_tok.astype(bf16)

    # ---- VMEM budget / cost hints ----
    try:
        vmem_cap = int(pltpu.get_tpu_info().vmem_capacity_bytes)
    except Exception:
        vmem_cap = 64 * 2**20                    # conservative (v7x per-TC)
    resident = (2 * (C * C + 2 * C * C + C * O)                  # bf16 weights
                + 4 * (HWp * 2 * C + 3 * C + O + 2 * C * num_heads))
    per_step = 2 * (2 * B * HWp * C) + 4 * (2 * B * O)           # buffered x / out
    temps = 4 * (10 * B * HWp * C + 8 * B * C)                   # f32 intermediates
    need = 2 * resident + per_step + temps + (4 << 20)
    vmem_limit = int(min(max(need, 32 << 20), vmem_cap - (8 << 20)))

    flops = int(N_pad * (2 * HWp * C * 2 * C                     # fused k/v proj
                         + 2 * C * C + 2 * C * O                 # q / context proj
                         + 4 * (HWp + 1) * C * num_heads         # head sum/expand
                         + 6 * (HWp + 1) * C))                   # elementwise
    cost = pl.CostEstimate(
        flops=flops,
        transcendentals=int(N_pad * (HWp + 1) * num_heads),
        bytes_accessed=int(2 * N_pad * HWp * C + 4 * N_pad * O + resident),
    )

    def _inv(rows, cols):
        # Grid-invariant operand: single-buffered when the jax version supports
        # pipeline_mode (halves resident weight VMEM at CLIP scale).
        try:
            return pl.BlockSpec((rows, cols), lambda i: (0, 0),
                                pipeline_mode=pl.Buffered(1))
        except Exception:
            return pl.BlockSpec((rows, cols), lambda i: (0, 0))

    kernel = functools.partial(_attn_pool_kernel, hw_valid=HW)

    out3 = pl.pallas_call(
        kernel,
        out_shape=jax.ShapeDtypeStruct((G, B, O), x_nchw.dtype),
        grid_spec=pltpu.PrefetchScalarGridSpec(
            num_scalar_prefetch=0,
            grid=(G,),
            in_specs=[
                pl.BlockSpec((B, HWp, C), lambda i: (i, 0, 0)),  # x tokens (bf16)
                _inv(HWp, 2 * C),        # posr @ [Wk|Wv]
                _inv(1, C),              # pos0 @ Wq*scale
                _inv(1, 2 * C),          # pos0 @ [Wk|Wv]
                _inv(C, C),              # Wq^T * scale (bf16)
                _inv(C, 2 * C),          # [Wk^T | Wv^T] (bf16)
                _inv(C, O),              # Wc^T (bf16)
                _inv(1, O),              # context bias
                _inv(C, num_heads),      # head segment-sum matrix
                _inv(num_heads, C),      # head expand matrix
            ],
            out_specs=pl.BlockSpec((1, B, O), lambda i: (i, 0, 0)),
        ),
        compiler_params=pltpu.CompilerParams(
            dimension_semantics=("parallel",),   # batch steps are independent
            vmem_limit_bytes=vmem_limit,
        ),
        cost_estimate=cost,
    )(x_tok, posr_kv, pos0_q, pos0_kv, wq_bf, wkv_bf, wc_bf, bc2, esum, eexp)

    return out3.reshape(N_pad, O)[:N]


def reference_attention_pool2d(x_nchw, pos, wq_t, wk_t, wv_t, wc_t, bc, num_heads):
    # Pure-JAX f32 reference mirroring the PyTorch forward exactly.
    N, C, H, W = x_nchw.shape
    hd = C // num_heads
    x = x_nchw.reshape(N, C, H * W).transpose(2, 0, 1)               # (HW, N, C)
    x = jnp.concatenate([x.mean(axis=0, keepdims=True), x], axis=0)  # (S, N, C)
    x = x + pos[:, None, :]
    q = (x[0] @ wq_t).reshape(N, num_heads, hd) * (hd ** -0.5)       # (N, h, d)
    k = (x @ wk_t).reshape(-1, N, num_heads, hd)                     # (S, N, h, d)
    v = (x @ wv_t).reshape(-1, N, num_heads, hd)
    scores = jnp.einsum('nhd,snhd->nhs', q, k)
    p = jax.nn.softmax(scores, axis=-1)
    ctx = jnp.einsum('nhs,snhd->nhd', p, v).reshape(N, C)
    return ctx @ wc_t + bc[None, :]


if __name__ == "__main__":
    # Small shapes consistent with the module: spacial_dim=5 (HW=25, exercises
    # the sublane pad + key-mask path), embed_dim=32, num_heads=4 (head_dim=8),
    # output_dim=16, batch=10 (exercises batch padding and a 2-step grid).
    N, C, Hs, Ws = 10, 32, 5, 5
    num_heads = 4
    out_dim = 16
    S = Hs * Ws + 1

    key = jax.random.PRNGKey(0)
    kx, kp, kq, kk, kv, kc, kb = jax.random.split(key, 7)
    x = jax.random.normal(kx, (N, C, Hs, Ws), jnp.float32)
    # positional_embedding ~ randn(S, C) / sqrt(C)
    pos = jax.random.normal(kp, (S, C), jnp.float32) / math.sqrt(C)
    # Linear weights stored pre-transposed as (in_features, out_features): y = x @ W
    wq_t = jax.random.normal(kq, (C, C), jnp.float32) / math.sqrt(C)
    wk_t = jax.random.normal(kk, (C, C), jnp.float32) / math.sqrt(C)
    wv_t = jax.random.normal(kv, (C, C), jnp.float32) / math.sqrt(C)
    wc_t = jax.random.normal(kc, (C, out_dim), jnp.float32) / math.sqrt(C)
    bc = jax.random.normal(kb, (out_dim,), jnp.float32) * 0.01

    out = attention_pool2d(x, pos, wq_t, wk_t, wv_t, wc_t, bc, num_heads)
    out = jax.block_until_ready(out)

    ref = reference_attention_pool2d(x, pos, wq_t, wk_t, wv_t, wc_t, bc, num_heads)
    # bf16 matmul operands (f32 accumulation / f32 softmax) -> looser tolerance.
    np.testing.assert_allclose(np.asarray(out), np.asarray(ref),
                               rtol=6e-2, atol=6e-2)
    print("KERNEL_OK")
</pallas_src>

<mosaic_0001>
module attributes {stable_mosaic.version = 11 : i64} {
  func.func @_attn_pool_kernel(%arg0: i32, %arg1: memref<8x32x32xbf16, #tpu.memory_space<vmem>>, %arg2: memref<32x64xf32, #tpu.memory_space<vmem>>, %arg3: memref<1x32xf32, #tpu.memory_space<vmem>>, %arg4: memref<1x64xf32, #tpu.memory_space<vmem>>, %arg5: memref<32x32xbf16, #tpu.memory_space<vmem>>, %arg6: memref<32x64xbf16, #tpu.memory_space<vmem>>, %arg7: memref<32x16xbf16, #tpu.memory_space<vmem>>, %arg8: memref<1x16xf32, #tpu.memory_space<vmem>>, %arg9: memref<32x4xf32, #tpu.memory_space<vmem>>, %arg10: memref<4x32xf32, #tpu.memory_space<vmem>>, %arg11: memref<1x8x16xf32, #tpu.memory_space<vmem>>) attributes {dimension_semantics = [#tpu.dimension_semantics<parallel>], iteration_bounds = array<i64: 2>, scalar_prefetch = 0 : i64, scratch_operands = 0 : i64, tpu.core_type = #tpu.core_type<tc>, window_params = [{transform_indices = @transform_0, window_bounds = array<i64: 8, 32, 32>}, {pipeline_mode = #tpu.pipeline_mode<synchronous>, transform_indices = @transform_1, window_bounds = array<i64: 32, 64>}, {pipeline_mode = #tpu.pipeline_mode<synchronous>, transform_indices = @transform_2, window_bounds = array<i64: 1, 32>}, {pipeline_mode = #tpu.pipeline_mode<synchronous>, transform_indices = @transform_3, window_bounds = array<i64: 1, 64>}, {pipeline_mode = #tpu.pipeline_mode<synchronous>, transform_indices = @transform_4, window_bounds = array<i64: 32, 32>}, {pipeline_mode = #tpu.pipeline_mode<synchronous>, transform_indices = @transform_5, window_bounds = array<i64: 32, 64>}, {pipeline_mode = #tpu.pipeline_mode<synchronous>, transform_indices = @transform_6, window_bounds = array<i64: 32, 16>}, {pipeline_mode = #tpu.pipeline_mode<synchronous>, transform_indices = @transform_7, window_bounds = array<i64: 1, 16>}, {pipeline_mode = #tpu.pipeline_mode<synchronous>, transform_indices = @transform_8, window_bounds = array<i64: 32, 4>}, {pipeline_mode = #tpu.pipeline_mode<synchronous>, transform_indices = @transform_9, window_bounds = array<i64: 4, 32>}, {transform_indices = @transform_10, window_bounds = array<i64: 1, 8, 16>}]} {
    %c0 = arith.constant 0 : index
    %c0_0 = arith.constant 0 : index
    %c0_1 = arith.constant 0 : index
    %0 = vector.load %arg1[%c0, %c0_0, %c0_1] : memref<8x32x32xbf16, #tpu.memory_space<vmem>>, vector<8x32x32xbf16>
    %1 = vector.shape_cast %0 : vector<8x32x32xbf16> to vector<256x32xbf16>
    %c0_2 = arith.constant 0 : index
    %c0_3 = arith.constant 0 : index
    %2 = vector.load %arg6[%c0_2, %c0_3] : memref<32x64xbf16, #tpu.memory_space<vmem>>, vector<32x64xbf16>
    %cst = arith.constant dense<0.000000e+00> : vector<256x64xf32>
    %3 = tpu.matmul %1, %2, %cst {dimension_numbers = #tpu.dot_dimension_numbers<[1], [0], [0], [1], [0, 0, 1, 1], [], []>} : vector<256x32xbf16>, vector<32x64xbf16>, vector<256x64xf32> -> vector<256x64xf32>
    %4 = vector.shape_cast %3 : vector<256x64xf32> to vector<8x32x64xf32>
    %5 = arith.extf %0 : vector<8x32x32xbf16> to vector<8x32x32xf32>
    %cst_4 = arith.constant dense<0.000000e+00> : vector<8x32xf32>
    %6 = vector.multi_reduction <add>, %5, %cst_4 [1] : vector<8x32x32xf32> to vector<8x32xf32>
    %cst_5 = arith.constant 4.000000e-02 : f32
    %7 = vector.broadcast %cst_5 : f32 to vector<8x32xf32>
    %8 = arith.mulf %6, %7 : vector<8x32xf32>
    %cst_6 = arith.constant dense<0.000000e+00> : vector<8x64xf32>
    %9 = vector.multi_reduction <add>, %4, %cst_6 [1] : vector<8x32x64xf32> to vector<8x64xf32>
    %cst_7 = arith.constant 4.000000e-02 : f32
    %10 = vector.broadcast %cst_7 : f32 to vector<8x64xf32>
    %11 = arith.mulf %9, %10 : vector<8x64xf32>
    %c0_8 = arith.constant 0 : index
    %c0_9 = arith.constant 0 : index
    %12 = vector.load %arg4[%c0_8, %c0_9] : memref<1x64xf32, #tpu.memory_space<vmem>>, vector<1x64xf32>
    %13 = vector.broadcast %12 : vector<1x64xf32> to vector<8x64xf32>
    %14 = arith.addf %11, %13 : vector<8x64xf32>
    %c0_10 = arith.constant 0 : index
    %c0_11 = arith.constant 0 : index
    %15 = vector.load %arg2[%c0_10, %c0_11] : memref<32x64xf32, #tpu.memory_space<vmem>>, vector<32x64xf32>
    %16 = vector.shape_cast %15 : vector<32x64xf32> to vector<1x32x64xf32>
    %17 = vector.broadcast %16 : vector<1x32x64xf32> to vector<8x32x64xf32>
    %18 = arith.addf %4, %17 : vector<8x32x64xf32>
    %19 = arith.truncf %8 : vector<8x32xf32> to vector<8x32xbf16>
    %c0_12 = arith.constant 0 : index
    %c0_13 = arith.constant 0 : index
    %20 = vector.load %arg5[%c0_12, %c0_13] : memref<32x32xbf16, #tpu.memory_space<vmem>>, vector<32x32xbf16>
    %cst_14 = arith.constant dense<0.000000e+00> : vector<8x32xf32>
    %21 = tpu.matmul %19, %20, %cst_14 {dimension_numbers = #tpu.dot_dimension_numbers<[1], [0], [0], [1], [0, 0, 1, 1], [], []>} : vector<8x32xbf16>, vector<32x32xbf16>, vector<8x32xf32> -> vector<8x32xf32>
    %c0_15 = arith.constant 0 : index
    %c0_16 = arith.constant 0 : index
    %22 = vector.load %arg3[%c0_15, %c0_16] : memref<1x32xf32, #tpu.memory_space<vmem>>, vector<1x32xf32>
    %23 = vector.broadcast %22 : vector<1x32xf32> to vector<8x32xf32>
    %24 = arith.addf %21, %23 : vector<8x32xf32>
    %25 = vector.extract_strided_slice %18 {offsets = [0, 0, 0], sizes = [8, 32, 32], strides = [1, 1, 1]} : vector<8x32x64xf32> to vector<8x32x32xf32>
    %26 = vector.extract_strided_slice %18 {offsets = [0, 0, 32], sizes = [8, 32, 32], strides = [1, 1, 1]} : vector<8x32x64xf32> to vector<8x32x32xf32>
    %27 = vector.extract_strided_slice %14 {offsets = [0, 0], sizes = [8, 32], strides = [1, 1]} : vector<8x64xf32> to vector<8x32xf32>
    %28 = vector.extract_strided_slice %14 {offsets = [0, 32], sizes = [8, 32], strides = [1, 1]} : vector<8x64xf32> to vector<8x32xf32>
    %c0_17 = arith.constant 0 : index
    %c0_18 = arith.constant 0 : index
    %29 = vector.load %arg9[%c0_17, %c0_18] : memref<32x4xf32, #tpu.memory_space<vmem>>, vector<32x4xf32>
    %c0_19 = arith.constant 0 : index
    %c0_20 = arith.constant 0 : index
    %30 = vector.load %arg10[%c0_19, %c0_20] : memref<4x32xf32, #tpu.memory_space<vmem>>, vector<4x32xf32>
    %31 = vector.shape_cast %24 : vector<8x32xf32> to vector<8x1x32xf32>
    %32 = vector.broadcast %31 : vector<8x1x32xf32> to vector<8x32x32xf32>
    %33 = arith.mulf %25, %32 : vector<8x32x32xf32>
    %34 = vector.shape_cast %33 : vector<8x32x32xf32> to vector<256x32xf32>
    %cst_21 = arith.constant dense<0.000000e+00> : vector<256x4xf32>
    %35 = tpu.matmul %34, %29, %cst_21 {dimension_numbers = #tpu.dot_dimension_numbers<[1], [0], [0], [1], [0, 0, 1, 1], [], []>} : vector<256x32xf32>, vector<32x4xf32>, vector<256x4xf32> -> vector<256x4xf32>
    %36 = vector.shape_cast %35 : vector<256x4xf32> to vector<8x32x4xf32>
    %37 = arith.mulf %24, %27 : vector<8x32xf32>
    %cst_22 = arith.constant dense<0.000000e+00> : vector<8x4xf32>
    %38 = tpu.matmul %37, %29, %cst_22 {dimension_numbers = #tpu.dot_dimension_numbers<[1], [0], [0], [1], [0, 0, 1, 1], [], []>} : vector<8x32xf32>, vector<32x4xf32>, vector<8x4xf32> -> vector<8x4xf32>
    %39 = tpu.iota {dimensions = array<i32: 1>} : vector<1x32x1xi32>
    %c25_i32 = arith.constant 25 : i32
    %40 = vector.broadcast %c25_i32 : i32 to vector<1x32x1xi32>
    %41 = arith.cmpi slt, %39, %40 : vector<1x32x1xi32>
    %cst_23 = arith.constant -1.000000e+30 : f32
    %42 = vector.shape_cast %41 : vector<1x32x1xi1> to vector<1x32x1xi1>
    %43 = vector.broadcast %42 : vector<1x32x1xi1> to vector<8x32x4xi1>
    %44 = vector.broadcast %cst_23 : f32 to vector<8x32x4xf32>
    %45 = arith.select %43, %36, %44 : vector<8x32x4xi1>, vector<8x32x4xf32>
    %cst_24 = arith.constant dense<0xFF800000> : vector<8x4xf32>
    %46 = vector.multi_reduction <maximumf>, %45, %cst_24 [1] : vector<8x32x4xf32> to vector<8x4xf32>
    %47 = arith.maximumf %46, %38 : vector<8x4xf32>
    %48 = vector.shape_cast %47 : vector<8x4xf32> to vector<8x1x4xf32>
    %49 = vector.broadcast %48 : vector<8x1x4xf32> to vector<8x32x4xf32>
    %50 = arith.subf %45, %49 : vector<8x32x4xf32>
    %51 = math.exp %50 : vector<8x32x4xf32>
    %52 = arith.subf %38, %47 : vector<8x4xf32>
    %53 = math.exp %52 : vector<8x4xf32>
    %cst_25 = arith.constant dense<0.000000e+00> : vector<8x4xf32>
    %54 = vector.multi_reduction <add>, %51, %cst_25 [1] : vector<8x32x4xf32> to vector<8x4xf32>
    %55 = arith.addf %54, %53 : vector<8x4xf32>
    %56 = vector.shape_cast %51 : vector<8x32x4xf32> to vector<256x4xf32>
    %cst_26 = arith.constant dense<0.000000e+00> : vector<256x32xf32>
    %57 = tpu.matmul %56, %30, %cst_26 {dimension_numbers = #tpu.dot_dimension_numbers<[1], [0], [0], [1], [0, 0, 1, 1], [], []>} : vector<256x4xf32>, vector<4x32xf32>, vector<256x32xf32> -> vector<256x32xf32>
    %58 = vector.shape_cast %57 : vector<256x32xf32> to vector<8x32x32xf32>
    %59 = arith.mulf %58, %26 : vector<8x32x32xf32>
    %cst_27 = arith.constant dense<0.000000e+00> : vector<8x32xf32>
    %60 = vector.multi_reduction <add>, %59, %cst_27 [1] : vector<8x32x32xf32> to vector<8x32xf32>
    %cst_28 = arith.constant dense<0.000000e+00> : vector<8x32xf32>
    %61 = tpu.matmul %53, %30, %cst_28 {dimension_numbers = #tpu.dot_dimension_numbers<[1], [0], [0], [1], [0, 0, 1, 1], [], []>} : vector<8x4xf32>, vector<4x32xf32>, vector<8x32xf32> -> vector<8x32xf32>
    %62 = arith.mulf %61, %28 : vector<8x32xf32>
    %63 = arith.addf %60, %62 : vector<8x32xf32>
    %64 = tpu.reciprocal %55 {approx = true} : vector<8x4xf32> -> vector<8x4xf32>
    %cst_29 = arith.constant dense<0.000000e+00> : vector<8x32xf32>
    %65 = tpu.matmul %64, %30, %cst_29 {dimension_numbers = #tpu.dot_dimension_numbers<[1], [0], [0], [1], [0, 0, 1, 1], [], []>} : vector<8x4xf32>, vector<4x32xf32>, vector<8x32xf32> -> vector<8x32xf32>
    %66 = arith.mulf %63, %65 : vector<8x32xf32>
    %67 = arith.truncf %66 : vector<8x32xf32> to vector<8x32xbf16>
    %c0_30 = arith.constant 0 : index
    %c0_31 = arith.constant 0 : index
    %68 = vector.load %arg7[%c0_30, %c0_31] : memref<32x16xbf16, #tpu.memory_space<vmem>>, vector<32x16xbf16>
    %cst_32 = arith.constant dense<0.000000e+00> : vector<8x16xf32>
    %69 = tpu.matmul %67, %68, %cst_32 {dimension_numbers = #tpu.dot_dimension_numbers<[1], [0], [0], [1], [0, 0, 1, 1], [], []>} : vector<8x32xbf16>, vector<32x16xbf16>, vector<8x16xf32> -> vector<8x16xf32>
    %c0_33 = arith.constant 0 : index
    %c0_34 = arith.constant 0 : index
    %70 = vector.load %arg8[%c0_33, %c0_34] : memref<1x16xf32, #tpu.memory_space<vmem>>, vector<1x16xf32>
    %71 = vector.broadcast %70 : vector<1x16xf32> to vector<8x16xf32>
    %72 = arith.addf %69, %71 : vector<8x16xf32>
    %73 = vector.shape_cast %72 : vector<8x16xf32> to vector<1x8x16xf32>
    %c0_35 = arith.constant 0 : index
    %c0_36 = arith.constant 0 : index
    %c0_37 = arith.constant 0 : index
    %74 = vector.load %arg11[%c0_35, %c0_36, %c0_37] : memref<1x8x16xf32, #tpu.memory_space<vmem>>, vector<1x8x16xf32>
    tpu.vector_store %arg11[%c0_35, %c0_36, %c0_37], %73 {strides = array<i32>} : memref<1x8x16xf32, #tpu.memory_space<vmem>>, vector<1x8x16xf32>,
    return
  }
  func.func @transform_0(%arg0: i32) -> (i32, i32, i32) {
    %c0_i32 = arith.constant 0 : i32
    %c0_i32_0 = arith.constant 0 : i32
    %c0_i32_1 = arith.constant 0 : i32
    return %arg0, %c0_i32, %c0_i32_0 : i32, i32, i32
  }
  func.func @transform_1(%arg0: i32) -> (i32, i32) {
    %c0_i32 = arith.constant 0 : i32
    %c0_i32_0 = arith.constant 0 : i32
    %c0_i32_1 = arith.constant 0 : i32
    return %c0_i32, %c0_i32_0 : i32, i32
  }
  func.func @transform_2(%arg0: i32) -> (i32, i32) {
    %c0_i32 = arith.constant 0 : i32
    %c0_i32_0 = arith.constant 0 : i32
    %c0_i32_1 = arith.constant 0 : i32
    return %c0_i32, %c0_i32_0 : i32, i32
  }
  func.func @transform_3(%arg0: i32) -> (i32, i32) {
    %c0_i32 = arith.constant 0 : i32
    %c0_i32_0 = arith.constant 0 : i32
    %c0_i32_1 = arith.constant 0 : i32
    return %c0_i32, %c0_i32_0 : i32, i32
  }
  func.func @transform_4(%arg0: i32) -> (i32, i32) {
    %c0_i32 = arith.constant 0 : i32
    %c0_i32_0 = arith.constant 0 : i32
    %c0_i32_1 = arith.constant 0 : i32
    return %c0_i32, %c0_i32_0 : i32, i32
  }
  func.func @transform_5(%arg0: i32) -> (i32, i32) {
    %c0_i32 = arith.constant 0 : i32
    %c0_i32_0 = arith.constant 0 : i32
    %c0_i32_1 = arith.constant 0 : i32
    return %c0_i32, %c0_i32_0 : i32, i32
  }
  func.func @transform_6(%arg0: i32) -> (i32, i32) {
    %c0_i32 = arith.constant 0 : i32
    %c0_i32_0 = arith.constant 0 : i32
    %c0_i32_1 = arith.constant 0 : i32
    return %c0_i32, %c0_i32_0 : i32, i32
  }
  func.func @transform_7(%arg0: i32) -> (i32, i32) {
    %c0_i32 = arith.constant 0 : i32
    %c0_i32_0 = arith.constant 0 : i32
    %c0_i32_1 = arith.constant 0 : i32
    return %c0_i32, %c0_i32_0 : i32, i32
  }
  func.func @transform_8(%arg0: i32) -> (i32, i32) {
    %c0_i32 = arith.constant 0 : i32
    %c0_i32_0 = arith.constant 0 : i32
    %c0_i32_1 = arith.constant 0 : i32
    return %c0_i32, %c0_i32_0 : i32, i32
  }
  func.func @transform_9(%arg0: i32) -> (i32, i32) {
    %c0_i32 = arith.constant 0 : i32
    %c0_i32_0 = arith.constant 0 : i32
    %c0_i32_1 = arith.constant 0 : i32
    return %c0_i32, %c0_i32_0 : i32, i32
  }
  func.func @transform_10(%arg0: i32) -> (i32, i32, i32) {
    %c0_i32 = arith.constant 0 : i32
    %c0_i32_0 = arith.constant 0 : i32
    %c0_i32_1 = arith.constant 0 : i32
    return %arg0, %c0_i32, %c0_i32_0 : i32, i32, i32
  }
}

</mosaic_0001>

<llo_original>
// kernel: tpu_custom_call.1
$region0: #{tpu_custom_call.1}
  #allocation0 [shape = 'u32[]', space=smem, size = 0x4, offset = 0x4, fixed_abs, tag = 'smem constant byte address 0x4 - core index']
  #allocation1 [shape = 'u32[144,128]{1,0:T(1,128)}', space=vmem, size = 0x12000, scoped, tag = 'internal scratch']
  %s0 = inlined_call_operand.hbm [shape: bf16[16,32,32], index: 0, kind: input, shape index: {}]
  %s1 = inlined_call_operand.vmem [shape: f32[32,64], index: 1, kind: input, shape index: {}]
  %s2 = inlined_call_operand.hbm [shape: f32[1,32], index: 2, kind: input, shape index: {}]
  %s3 = inlined_call_operand.hbm [shape: f32[1,64], index: 3, kind: input, shape index: {}]
  %s4 = inlined_call_operand.vmem [shape: bf16[32,32], index: 4, kind: input, shape index: {}]
  %s5 = inlined_call_operand.vmem [shape: bf16[32,64], index: 5, kind: input, shape index: {}]
  %s6 = inlined_call_operand.vmem [shape: bf16[32,16], index: 6, kind: input, shape index: {}]
  %s7 = inlined_call_operand.hbm [shape: f32[1,16], index: 7, kind: input, shape index: {}]
  %s8 = inlined_call_operand.vmem [shape: f32[32,4], index: 8, kind: input, shape index: {}]
  %s9 = inlined_call_operand.vmem [shape: f32[4,32], index: 9, kind: input, shape index: {}]
  %s10 = inlined_call_operand.hbm [shape: f32[2,8,16], index: 10, kind: output, shape index: {}]
  %s11 = sld [smem:[#allocation0]]
  $region89: #{tpu_custom_call.1} parent=0
    _
  %s13 = ssub.s32 1, %s11
  %s14 = scalar_select 0, %s13, %s11
  $region1: #{tpu_custom_call.1} parent=0
    #allocation2 [shape = 'u8[131072]{0}', space=vmem, size = 0x20000, scoped, tag = 'input window, operand 0']
    #allocation3 [shape = 's32[2]{0}', space=sflag, size = 0x8, scoped, tag = 'scoped memory for tpu_custom_call.1']
    #allocation4 [shape = 's32[2]{0}', space=sflag, size = 0x8, scoped, tag = 'scoped memory for tpu_custom_call.1']
    #allocation5 [shape = 'u8[512]{0}', space=vmem, size = 0x400, scoped, tag = 'input window, operand 2, single buffered']
    #allocation6 [shape = 's32[1]{0}', space=sflag, size = 0x4, scoped, tag = 'scoped memory for tpu_custom_call.1']
    #allocation7 [shape = 'u8[512]{0}', space=vmem, size = 0x400, scoped, tag = 'input window, operand 3, single buffered']
    #allocation8 [shape = 'u8[512]{0}', space=vmem, size = 0x400, scoped, tag = 'input window, operand 7, single buffered']
    #allocation9 [shape = 's32[1]{0}', space=sflag, size = 0x4, scoped, tag = 'scoped memory for tpu_custom_call.1']
    #allocation10 [shape = 'u8[8192]{0}', space=vmem, size = 0x2000, scoped, tag = 'output window, operand 0']
    %15 = vsyncpa [#allocation3], 0
    %s16 = scalar_lea.sflag [#allocation3], 1
    %17 = vsyncpa %s16, 0
    %18 = vsyncpa [#allocation6], 0
    %19 = vsyncpa [#allocation9], 0
    %20 = vsyncpa [#allocation4], 0
    %s21 = scalar_lea.sflag [#allocation4], 1
    %22 = vsyncpa %s21, 0
    loop: start=0, step=1, limit=4
    $region2: #{tpu_custom_call.1} parent=1 // loop_pre_header
      _
    $region3: #{tpu_custom_call.1} parent=1 // loop_header
      %s24 = sphi 0, %s28
      %p25 = scmp.ge.s32.totalorder %s24, 4
      %s34 = sphi 0, %s36
      %s37 = sphi 0, %s34
      %s38 = sphi 0, %s37
      %s54 = sphi 0, %s38
      %s58 = sphi 0, %s58
      %s60 = sphi 0, %s58
      %s61 = sphi 0, %s60
      %s75 = sphi 0, %s61
      %s79 = sphi 0, %s79
      %s81 = sphi 0, %s79
      %s82 = sphi 0, %s81
      %s96 = sphi 0, %s82
      %s100 = sphi 0, %s100
      %s102 = sphi 0, %s100
      %s103 = sphi 0, %s102
      %s117 = sphi 0, %s103
      %s121 = sphi 0, %s121
      %s123 = sphi 0, %s121
      %s124 = sphi 0, %s123
      %s138 = sphi 0, %s124
      %s142 = sphi 0, %s142
      %s144 = sphi 0, %s142
      %s145 = sphi 0, %s144
      %s159 = sphi 0, %s145
      %s163 = sphi 0, %s163
      %s165 = sphi 0, %s163
      %s166 = sphi 0, %s165
      %s180 = sphi 0, %s166
      %s184 = sphi 0, %s184
      %s186 = sphi 0, %s184
      %s187 = sphi 0, %s186
      %s201 = sphi 0, %s187
      %s205 = sphi 0, %s205
      %s207 = sphi 0, %s205
      %s208 = sphi 0, %s207
      %s222 = sphi 0, %s208
      %s226 = sphi 0, %s226
      %s228 = sphi 0, %s226
      %s229 = sphi 0, %s228
      %s243 = sphi 0, %s229
      %s249 = sphi 0, %s251
      %s252 = sphi 0, %s249
      %s253 = sphi 0, %s252
      %s269 = sphi 0, %s253
    $region4: #{tpu_custom_call.1} parent=1 // loop_header_branch
      %27 = sbr.rel (%p25) target = $region8
    $region5: #{tpu_custom_call.1} parent=1 // loop_body
      %s29 = ssub.s32 %s24, 1
      %s30 = ssub.s32 %s24, 2
      %s31 = sadd.s32 %s24, 1
      %s32 = ssub.s32 %s24, %s31
      %p33 = scmp.eq.s32.totalorder %s32, 0
      %s35 = sadd.s32 %s34, 1
      %s36 = scalar_select %p33, %s34, %s35
      %p39 = pneg %p33
      %p40 = scmp.eq.s32.totalorder %s24, 1
      %p41 = por %p39, %p40
      %p42 = scmp.ne.s32.totalorder %s34, %s37
      %p43 = scmp.eq.s32.totalorder %s24, 0
      %p44 = por %p42, %p43
      %p45 = scmp.ne.s32.totalorder %s34, %s37
      %p46 = scmp.eq.s32.totalorder %s29, 1
      %p47 = por %p45, %p46
      %p48 = scmp.ne.s32.totalorder %s37, %s38
      %p49 = scmp.eq.s32.totalorder %s29, 0
      %p50 = por %p48, %p49
      %p51 = scmp.ne.s32.totalorder %s37, %s38
      %p52 = scmp.eq.s32.totalorder %s30, 1
      %p53 = por %p51, %p52
      %p55 = scmp.ne.s32.totalorder %s38, %s54
      %p56 = scmp.eq.s32.totalorder %s30, 0
      %p57 = por %p55, %p56
      %s59 = sadd.s32 %s58, 1
      %p62 = scmp.eq.s32.totalorder %s24, 1
      %p63 = scmp.ne.s32.totalorder %s58, %s60
      %p64 = scmp.eq.s32.totalorder %s24, 0
      %p65 = por %p63, %p64
      %p66 = scmp.ne.s32.totalorder %s58, %s60
      %p67 = scmp.eq.s32.totalorder %s29, 1
      %p68 = por %p66, %p67
      %p69 = scmp.ne.s32.totalorder %s60, %s61
      %p70 = scmp.eq.s32.totalorder %s29, 0
      %p71 = por %p69, %p70
      %p72 = scmp.ne.s32.totalorder %s60, %s61
      %p73 = scmp.eq.s32.totalorder %s30, 1
      %p74 = por %p72, %p73
      %p76 = scmp.ne.s32.totalorder %s61, %s75
      %p77 = scmp.eq.s32.totalorder %s30, 0
      %p78 = por %p76, %p77
      %s80 = sadd.s32 %s79, 1
      %p83 = scmp.eq.s32.totalorder %s24, 1
      %p84 = scmp.ne.s32.totalorder %s79, %s81
      %p85 = scmp.eq.s32.totalorder %s24, 0
      %p86 = por %p84, %p85
      %p87 = scmp.ne.s32.totalorder %s79, %s81
      %p88 = scmp.eq.s32.totalorder %s29, 1
      %p89 = por %p87, %p88
      %p90 = scmp.ne.s32.totalorder %s81, %s82
      %p91 = scmp.eq.s32.totalorder %s29, 0
      %p92 = por %p90, %p91
      %p93 = scmp.ne.s32.totalorder %s81, %s82
      %p94 = scmp.eq.s32.totalorder %s30, 1
      %p95 = por %p93, %p94
      %p97 = scmp.ne.s32.totalorder %s82, %s96
      %p98 = scmp.eq.s32.totalorder %s30, 0
      %p99 = por %p97, %p98
      %s101 = sadd.s32 %s100, 1
      %p104 = scmp.eq.s32.totalorder %s24, 1
      %p105 = scmp.ne.s32.totalorder %s100, %s102
      %p106 = scmp.eq.s32.totalorder %s24, 0
      %p107 = por %p105, %p106
      %p108 = scmp.ne.s32.totalorder %s100, %s102
      %p109 = scmp.eq.s32.totalorder %s29, 1
      %p110 = por %p108, %p109
      %p111 = scmp.ne.s32.totalorder %s102, %s103
      %p112 = scmp.eq.s32.totalorder %s29, 0
      %p113 = por %p111, %p112
      %p114 = scmp.ne.s32.totalorder %s102, %s103
      %p115 = scmp.eq.s32.totalorder %s30, 1
      %p116 = por %p114, %p115
      %p118 = scmp.ne.s32.totalorder %s103, %s117
      %p119 = scmp.eq.s32.totalorder %s30, 0
      %p120 = por %p118, %p119
      %s122 = sadd.s32 %s121, 1
      %p125 = scmp.eq.s32.totalorder %s24, 1
      %p126 = scmp.ne.s32.totalorder %s121, %s123
      %p127 = scmp.eq.s32.totalorder %s24, 0
      %p128 = por %p126, %p127
      %p129 = scmp.ne.s32.totalorder %s121, %s123
      %p130 = scmp.eq.s32.totalorder %s29, 1
      %p131 = por %p129, %p130
      %p132 = scmp.ne.s32.totalorder %s123, %s124
      %p133 = scmp.eq.s32.totalorder %s29, 0
      %p134 = por %p132, %p133
      %p135 = scmp.ne.s32.totalorder %s123, %s124
      %p136 = scmp.eq.s32.totalorder %s30, 1
      %p137 = por %p135, %p136
      %p139 = scmp.ne.s32.totalorder %s124, %s138
      %p140 = scmp.eq.s32.totalorder %s30, 0
      %p141 = por %p139, %p140
      %s143 = sadd.s32 %s142, 1
      %p146 = scmp.eq.s32.totalorder %s24, 1
      %p147 = scmp.ne.s32.totalorder %s142, %s144
      %p148 = scmp.eq.s32.totalorder %s24, 0
      %p149 = por %p147, %p148
      %p150 = scmp.ne.s32.totalorder %s142, %s144
      %p151 = scmp.eq.s32.totalorder %s29, 1
      %p152 = por %p150, %p151
      %p153 = scmp.ne.s32.totalorder %s144, %s145
      %p154 = scmp.eq.s32.totalorder %s29, 0
      %p155 = por %p153, %p154
      %p156 = scmp.ne.s32.totalorder %s144, %s145
      %p157 = scmp.eq.s32.totalorder %s30, 1
      %p158 = por %p156, %p157
      %p160 = scmp.ne.s32.totalorder %s145, %s159
      %p161 = scmp.eq.s32.totalorder %s30, 0
      %p162 = por %p160, %p161
      %s164 = sadd.s32 %s163, 1
      %p167 = scmp.eq.s32.totalorder %s24, 1
      %p168 = scmp.ne.s32.totalorder %s163, %s165
      %p169 = scmp.eq.s32.totalorder %s24, 0
      %p170 = por %p168, %p169
      %p171 = scmp.ne.s32.totalorder %s163, %s165
      %p172 = scmp.eq.s32.totalorder %s29, 1
      %p173 = por %p171, %p172
      %p174 = scmp.ne.s32.totalorder %s165, %s166
      %p175 = scmp.eq.s32.totalorder %s29, 0
      %p176 = por %p174, %p175
      %p177 = scmp.ne.s32.totalorder %s165, %s166
      %p178 = scmp.eq.s32.totalorder %s30, 1
      %p179 = por %p177, %p178
      %p181 = scmp.ne.s32.totalorder %s166, %s180
      %p182 = scmp.eq.s32.totalorder %s30, 0
      %p183 = por %p181, %p182
      %s185 = sadd.s32 %s184, 1
      %p188 = scmp.eq.s32.totalorder %s24, 1
      %p189 = scmp.ne.s32.totalorder %s184, %s186
      %p190 = scmp.eq.s32.totalorder %s24, 0
      %p191 = por %p189, %p190
      %p192 = scmp.ne.s32.totalorder %s184, %s186
      %p193 = scmp.eq.s32.totalorder %s29, 1
      %p194 = por %p192, %p193
      %p195 = scmp.ne.s32.totalorder %s186, %s187
      %p196 = scmp.eq.s32.totalorder %s29, 0
      %p197 = por %p195, %p196
      %p198 = scmp.ne.s32.totalorder %s186, %s187
      %p199 = scmp.eq.s32.totalorder %s30, 1
      %p200 = por %p198, %p199
      %p202 = scmp.ne.s32.totalorder %s187, %s201
      %p203 = scmp.eq.s32.totalorder %s30, 0
      %p204 = por %p202, %p203
      %s206 = sadd.s32 %s205, 1
      %p209 = scmp.eq.s32.totalorder %s24, 1
      %p210 = scmp.ne.s32.totalorder %s205, %s207
      %p211 = scmp.eq.s32.totalorder %s24, 0
      %p212 = por %p210, %p211
      %p213 = scmp.ne.s32.totalorder %s205, %s207
      %p214 = scmp.eq.s32.totalorder %s29, 1
      %p215 = por %p213, %p214
      %p216 = scmp.ne.s32.totalorder %s207, %s208
      %p217 = scmp.eq.s32.totalorder %s29, 0
      %p218 = por %p216, %p217
      %p219 = scmp.ne.s32.totalorder %s207, %s208
      %p220 = scmp.eq.s32.totalorder %s30, 1
      %p221 = por %p219, %p220
      %p223 = scmp.ne.s32.totalorder %s208, %s222
      %p224 = scmp.eq.s32.totalorder %s30, 0
      %p225 = por %p223, %p224
      %s227 = sadd.s32 %s226, 1
      %p230 = scmp.eq.s32.totalorder %s24, 1
      %p231 = scmp.ne.s32.totalorder %s226, %s228
      %p232 = scmp.eq.s32.totalorder %s24, 0
      %p233 = por %p231, %p232
      %p234 = scmp.ne.s32.totalorder %s226, %s228
      %p235 = scmp.eq.s32.totalorder %s29, 1
      %p236 = por %p234, %p235
      %p237 = scmp.ne.s32.totalorder %s228, %s229
      %p238 = scmp.eq.s32.totalorder %s29, 0
      %p239 = por %p237, %p238
      %p240 = scmp.ne.s32.totalorder %s228, %s229
      %p241 = scmp.eq.s32.totalorder %s30, 1
      %p242 = por %p240, %p241
      %p244 = scmp.ne.s32.totalorder %s229, %s243
      %p245 = scmp.eq.s32.totalorder %s30, 0
      %p246 = por %p244, %p245
      %s247 = ssub.s32 %s24, %s31
      %p248 = scmp.eq.s32.totalorder %s247, 0
      %s250 = sadd.s32 %s249, 1
      %s251 = scalar_select %p248, %s249, %s250
      %p254 = pneg %p248
      %p255 = scmp.eq.s32.totalorder %s24, 1
      %p256 = por %p254, %p255
      %p257 = scmp.ne.s32.totalorder %s249, %s252
      %p258 = scmp.eq.s32.totalorder %s24, 0
      %p259 = por %p257, %p258
      %p260 = scmp.ne.s32.totalorder %s249, %s252
      %p261 = scmp.eq.s32.totalorder %s29, 1
      %p262 = por %p260, %p261
      %p263 = scmp.ne.s32.totalorder %s252, %s253
      %p264 = scmp.eq.s32.totalorder %s29, 0
      %p265 = por %p263, %p264
      %p266 = scmp.ne.s32.totalorder %s252, %s253
      %p267 = scmp.eq.s32.totalorder %s30, 1
      %p268 = por %p266, %p267
      %p270 = scmp.ne.s32.totalorder %s253, %s269
      %p271 = scmp.eq.s32.totalorder %s30, 0
      %p272 = por %p270, %p271
      %p273 = scmp.le.s32.totalorder 1, %s24
      %p274 = scmp.lt.s32.totalorder %s24, 3
      %p275 = pnand %p273, %p274
      %p276 = pneg %p275
      // Predicated region
      $region9: #{tpu_custom_call.1} parent=5 // pred_check
        _
      $region10: #{tpu_custom_call.1} parent=5 // pred_check_branch
        %278 = sbr.rel (%p275) target = $region12
      $region11: #{tpu_custom_call.1} parent=5 // pred_region
        %s279 = ssub.s32 %s24, 1
        // Predicated region
        $region13: #{tpu_custom_call.1} parent=11 // pred_check
          %p280 = pneg %p71
        $region14: #{tpu_custom_call.1} parent=11 // pred_check_branch
          %282 = sbr.rel (%p280) target = $region16
        $region15: #{tpu_custom_call.1} parent=11 // pred_region
          _
        $region16: #{tpu_custom_call.1} parent=11 // pred_fallthru
          _
        // Predicated region
        $region17: #{tpu_custom_call.1} parent=11 // pred_check
          %p283 = pneg %p92
        $region18: #{tpu_custom_call.1} parent=11 // pred_check_branch
          %285 = sbr.rel (%p283) target = $region20
        $region19: #{tpu_custom_call.1} parent=11 // pred_region
          %s287 = ssub.s32 16, 16
          %288 = vsyncadd [#allocation6], %s287
          %s290 = sshll.u32 [#allocation5], 4
          %s291 = int_to_ptr.vmem [resolvable:$true] %s290
          %293 = dma.hbm_to_vmem [thread:$0]  %s2, 16, %s291, [#allocation6]
        $region20: #{tpu_custom_call.1} parent=11 // pred_fallthru
          _
        // Predicated region
        $region21: #{tpu_custom_call.1} parent=11 // pred_check
          %p294 = pneg %p113
        $region22: #{tpu_custom_call.1} parent=11 // pred_check_branch
          %296 = sbr.rel (%p294) target = $region24
        $region23: #{tpu_custom_call.1} parent=11 // pred_region
          %s298 = ssub.s32 16, 16
          %299 = vsyncadd [#allocation6], %s298
          %s301 = sshll.u32 [#allocation7], 4
          %s302 = int_to_ptr.vmem [resolvable:$true] %s301
          %304 = dma.hbm_to_vmem [thread:$0]  %s3, 16, %s302, [#allocation6]
        $region24: #{tpu_custom_call.1} parent=11 // pred_fallthru
          _
        // Predicated region
        $region25: #{tpu_custom_call.1} parent=11 // pred_check
          %p305 = pneg %p134
        $region26: #{tpu_custom_call.1} parent=11 // pred_check_branch
          %307 = sbr.rel (%p305) target = $region28
        $region27: #{tpu_custom_call.1} parent=11 // pred_region
          _
        $region28: #{tpu_custom_call.1} parent=11 // pred_fallthru
          _
        // Predicated region
        $region29: #{tpu_custom_call.1} parent=11 // pred_check
          %p308 = pneg %p155
        $region30: #{tpu_custom_call.1} parent=11 // pred_check_branch
          %310 = sbr.rel (%p308) target = $region32
        $region31: #{tpu_custom_call.1} parent=11 // pred_region
          _
        $region32: #{tpu_custom_call.1} parent=11 // pred_fallthru
          _
        // Predicated region
        $region33: #{tpu_custom_call.1} parent=11 // pred_check
          %p311 = pneg %p176
        $region34: #{tpu_custom_call.1} parent=11 // pred_check_branch
          %313 = sbr.rel (%p311) target = $region36
        $region35: #{tpu_custom_call.1} parent=11 // pred_region
          _
        $region36: #{tpu_custom_call.1} parent=11 // pred_fallthru
          _
        // Predicated region
        $region37: #{tpu_custom_call.1} parent=11 // pred_check
          %p314 = pneg %p197
        $region38: #{tpu_custom_call.1} parent=11 // pred_check_branch
          %316 = sbr.rel (%p314) target = $region40
        $region39: #{tpu_custom_call.1} parent=11 // pred_region
          %s318 = ssub.s32 16, 16
          %319 = vsyncadd [#allocation9], %s318
          %s321 = sshll.u32 [#allocation8], 4
          %s322 = int_to_ptr.vmem [resolvable:$true] %s321
          %324 = dma.hbm_to_vmem [thread:$0]  %s7, 16, %s322, [#allocation9]
        $region40: #{tpu_custom_call.1} parent=11 // pred_fallthru
          _
        // Predicated region
        $region41: #{tpu_custom_call.1} parent=11 // pred_check
          %p325 = pneg %p218
        $region42: #{tpu_custom_call.1} parent=11 // pred_check_branch
          %327 = sbr.rel (%p325) target = $region44
        $region43: #{tpu_custom_call.1} parent=11 // pred_region
          _
        $region44: #{tpu_custom_call.1} parent=11 // pred_fallthru
          _
        // Predicated region
        $region45: #{tpu_custom_call.1} parent=11 // pred_check
          %p328 = pneg %p239
        $region46: #{tpu_custom_call.1} parent=11 // pred_check_branch
          %330 = sbr.rel (%p328) target = $region48
        $region47: #{tpu_custom_call.1} parent=11 // pred_region
          _
        $region48: #{tpu_custom_call.1} parent=11 // pred_fallthru
          _
      $region12: #{tpu_custom_call.1} parent=5 // pred_fallthru
        _
      %p331 = scmp.lt.s32.totalorder %s24, 2
      // Predicated region
      $region49: #{tpu_custom_call.1} parent=5 // pred_check
        %p332 = pneg %p331
      $region50: #{tpu_custom_call.1} parent=5 // pred_check_branch
        %334 = sbr.rel (%p332) target = $region52
      $region51: #{tpu_custom_call.1} parent=5 // pred_region
        // Predicated region
        $region53: #{tpu_custom_call.1} parent=51 // pred_check
          %p335 = pneg %p44
        $region54: #{tpu_custom_call.1} parent=51 // pred_check_branch
          %337 = sbr.rel (%p335) target = $region56
        $region55: #{tpu_custom_call.1} parent=51 // pred_region
          %s338 = sand.u32 %s34, 1
          %s339 = scalar_lea.sflag [#allocation3], %s338
          %s340 = sand.u32 %s34, 1
          %s341 = smul.addr %s340, 128
          %s342 = scalar_lea.vmem [#allocation2], %s341
          %s343 = smul.u32 8, %s24
          %s345 = ssub.s32 2048, 2048
          %346 = vsyncadd %s339, %s345
          %s347 = smul.addr %s343, 4
          %s348 = smul.addr %s347, 64
          %s349 = scalar_lea.hbm %s0, %s348
          %s350 = sshll.u32 %s342, 4
          %s351 = int_to_ptr.vmem [resolvable:$true] %s350
          %356 = dma.hbm_to_vmem [thread:$0]  %s349, 2048, %s351, %s339, 64, 64, 4
        $region56: #{tpu_custom_call.1} parent=51 // pred_fallthru
          _
      $region52: #{tpu_custom_call.1} parent=5 // pred_fallthru
        _
      %p357 = scmp.le.s32.totalorder 1, %s24
      %p358 = scmp.lt.s32.totalorder %s24, 3
      %p359 = pnand %p357, %p358
      %p360 = pneg %p359
      // Predicated region
      $region57: #{tpu_custom_call.1} parent=5 // pred_check
        _
      $region58: #{tpu_custom_call.1} parent=5 // pred_check_branch
        %362 = sbr.rel (%p359) target = $region60
      $region59: #{tpu_custom_call.1} parent=5 // pred_region
        %s363 = ssub.s32 %s24, 1
        %s364 = sand.u32 %s37, 1
        %s365 = scalar_lea.sflag [#allocation3], %s364
        %s366 = sand.u32 %s37, 1
        %s367 = smul.addr %s366, 128
        %s368 = scalar_lea.vmem [#allocation2], %s367
        // Predicated region
        $region61: #{tpu_custom_call.1} parent=59 // pred_check
          %p369 = pneg %p50
        $region62: #{tpu_custom_call.1} parent=59 // pred_check_branch
          %371 = sbr.rel (%p369) target = $region64
        $region63: #{tpu_custom_call.1} parent=59 // pred_region
          %372 = dma.done %s365, 2048
        $region64: #{tpu_custom_call.1} parent=59 // pred_fallthru
          _
        // Predicated region
        $region65: #{tpu_custom_call.1} parent=59 // pred_check
          %p373 = pneg %p92
        $region66: #{tpu_custom_call.1} parent=59 // pred_check_branch
          %375 = sbr.rel (%p373) target = $region68
        $region67: #{tpu_custom_call.1} parent=59 // pred_region
          %376 = dma.done [#allocation6], 16
        $region68: #{tpu_custom_call.1} parent=59 // pred_fallthru
          _
        // Predicated region
        $region69: #{tpu_custom_call.1} parent=59 // pred_check
          %p377 = pneg %p113
        $region70: #{tpu_custom_call.1} parent=59 // pred_check_branch
          %379 = sbr.rel (%p377) target = $region72
        $region71: #{tpu_custom_call.1} parent=59 // pred_region
          %380 = dma.done [#allocation6], 16
        $region72: #{tpu_custom_call.1} parent=59 // pred_fallthru
          _
        // Predicated region
        $region73: #{tpu_custom_call.1} parent=59 // pred_check
          %p381 = pneg %p197
        $region74: #{tpu_custom_call.1} parent=59 // pred_check_branch
          %383 = sbr.rel (%p381) target = $region76
        $region75: #{tpu_custom_call.1} parent=59 // pred_region
          %384 = dma.done [#allocation9], 16
        $region76: #{tpu_custom_call.1} parent=59 // pred_fallthru
          _
        %s385 = sand.u32 %s37, 1
        %s386 = scalar_lea.sflag [#allocation3], %s385
        %s387 = sand.u32 %s37, 1
        %s388 = smul.addr %s387, 128
        %s389 = scalar_lea.vmem [#allocation2], %s388
        %p390 = pneg %p50
        %p391 = pneg %p47
        %p392 = pneg %p71
        %p393 = pneg %p68
        %p394 = pneg %p92
        %p395 = pneg %p89
        %p396 = pneg %p113
        %p397 = pneg %p110
        %p398 = pneg %p134
        %p399 = pneg %p131
        %p400 = pneg %p155
        %p401 = pneg %p152
        %p402 = pneg %p176
        %p403 = pneg %p173
        %p404 = pneg %p197
        %p405 = pneg %p194
        %p406 = pneg %p218
        %p407 = pneg %p215
        %p408 = pneg %p239
        %p409 = pneg %p236
        %p410 = pneg %p265
        %p411 = pneg %p262
        %s412 = sand.u32 %s252, 1
        %s413 = scalar_lea.sflag [#allocation4], %s412
        %s414 = sand.u32 %s252, 1
        %s415 = smul.addr %s414, 8
        %s416 = scalar_lea.vmem [#allocation10], %s415
        %s417 = smul.u32 8, %s29
        %v419 = vld [vmem:[%s368] sm:$0xf]
        %v420 = vld [vmem:[%s368 + $0x4] sm:$0xf]
        %v421 = vld [vmem:[%s368 + $0x8] sm:$0xf]
        %v422 = vld [vmem:[%s368 + $0xc] sm:$0xf]
        %v423 = vld [vmem:[%s368 + $0x10] sm:$0xf]
        %v424 = vld [vmem:[%s368 + $0x14] sm:$0xf]
        %v425 = vld [vmem:[%s368 + $0x18] sm:$0xf]
        %v426 = vld [vmem:[%s368 + $0x1c] sm:$0xf]
        %v427 = vld [vmem:[%s368 + $0x20] sm:$0xf]
        %v428 = vld [vmem:[%s368 + $0x24] sm:$0xf]
        %v429 = vld [vmem:[%s368 + $0x28] sm:$0xf]
        %v430 = vld [vmem:[%s368 + $0x2c] sm:$0xf]
        %v431 = vld [vmem:[%s368 + $0x30] sm:$0xf]
        %v432 = vld [vmem:[%s368 + $0x34] sm:$0xf]
        %v433 = vld [vmem:[%s368 + $0x38] sm:$0xf]
        %v434 = vld [vmem:[%s368 + $0x3c] sm:$0xf]
        %v435 = vld [vmem:[%s368 + $0x40] sm:$0xf]
        %v436 = vld [vmem:[%s368 + $0x44] sm:$0xf]
        %v437 = vld [vmem:[%s368 + $0x48] sm:$0xf]
        %v438 = vld [vmem:[%s368 + $0x4c] sm:$0xf]
        %v439 = vld [vmem:[%s368 + $0x50] sm:$0xf]
        %v440 = vld [vmem:[%s368 + $0x54] sm:$0xf]
        %v441 = vld [vmem:[%s368 + $0x58] sm:$0xf]
        %v442 = vld [vmem:[%s368 + $0x5c] sm:$0xf]
        %v443 = vld [vmem:[%s368 + $0x60] sm:$0xf]
        %v444 = vld [vmem:[%s368 + $0x64] sm:$0xf]
        %v445 = vld [vmem:[%s368 + $0x68] sm:$0xf]
        %v446 = vld [vmem:[%s368 + $0x6c] sm:$0xf]
        %v447 = vld [vmem:[%s368 + $0x70] sm:$0xf]
        %v448 = vld [vmem:[%s368 + $0x74] sm:$0xf]
        %v449 = vld [vmem:[%s368 + $0x78] sm:$0xf]
        %v450 = vld [vmem:[%s368 + $0x7c] sm:$0xf]
        %v451 = vld [vmem:[%s5] sm:$0xf]
        %v452 = vld [vmem:[%s5 + $0x4] sm:$0xf]
        %v453 = vld [vmem:[%s5 + $0x8] sm:$0xf]
        %v454 = vld [vmem:[%s5 + $0xc] sm:$0xf]
        %v487 = vunpack.c.l.b16 %v419
        %v488 = vunpack.c.l.b16 %v420
        %v489 = vunpack.c.l.b16 %v421
        %v490 = vunpack.c.l.b16 %v422
        %v491 = vunpack.c.l.b16 %v423
        %v492 = vunpack.c.l.b16 %v424
        %v493 = vunpack.c.l.b16 %v425
        %v494 = vunpack.c.l.b16 %v426
        %v495 = vunpack.c.l.b16 %v427
        %v496 = vunpack.c.l.b16 %v428
        %v497 = vunpack.c.l.b16 %v429
        %v498 = vunpack.c.l.b16 %v430
        %v499 = vunpack.c.l.b16 %v431
        %v500 = vunpack.c.l.b16 %v432
        %v501 = vunpack.c.l.b16 %v433
        %v502 = vunpack.c.l.b16 %v434
        %v503 = vunpack.c.l.b16 %v435
        %v504 = vunpack.c.l.b16 %v436
        %v505 = vunpack.c.l.b16 %v437
        %v506 = vunpack.c.l.b16 %v438
        %v507 = vunpack.c.l.b16 %v439
        %v508 = vunpack.c.l.b16 %v440
        %v509 = vunpack.c.l.b16 %v441
        %v510 = vunpack.c.l.b16 %v442
        %v511 = vunpack.c.l.b16 %v443
        %v512 = vunpack.c.l.b16 %v444
        %v513 = vunpack.c.l.b16 %v445
        %v514 = vunpack.c.l.b16 %v446
        %v515 = vunpack.c.l.b16 %v447
        %v516 = vunpack.c.l.b16 %v448
        %v517 = vunpack.c.l.b16 %v449
        %v518 = vunpack.c.l.b16 %v450
        %v519 = vpack.c.b16 %v488, %v487
        %v520 = vpack.c.b16 %v490, %v489
        %v521 = vpack.c.b16 %v492, %v491
        %v522 = vpack.c.b16 %v494, %v493
        %v523 = vpack.c.b16 %v496, %v495
        %v524 = vpack.c.b16 %v498, %v497
        %v525 = vpack.c.b16 %v500, %v499
        %v526 = vpack.c.b16 %v502, %v501
        %v527 = vpack.c.b16 %v504, %v503
        %v528 = vpack.c.b16 %v506, %v505
        %v529 = vpack.c.b16 %v508, %v507
        %v530 = vpack.c.b16 %v510, %v509
        %v531 = vpack.c.b16 %v512, %v511
        %v532 = vpack.c.b16 %v514, %v513
        %v533 = vpack.c.b16 %v516, %v515
        %v534 = vpack.c.b16 %v518, %v517
        %v539 = vunpack.c.l.b16 %v451
        %v540 = vunpack.c.l.b16 %v452
        %v541 = vunpack.c.l.b16 %v453
        %v542 = vunpack.c.l.b16 %v454
        %v543 = vpack.c.b16 %v540, %v539
        %v544 = vpack.c.b16 %v542, %v541
        %vm547 = vcmask 261120
        %v549 = vsel %vm547, %v519, 0
        %v552 = vsel %vm547, %v520, 0
        %v555 = vsel %vm547, %v521, 0
        %v558 = vsel %vm547, %v522, 0
        %v561 = vsel %vm547, %v523, 0
        %v564 = vsel %vm547, %v524, 0
        %v567 = vsel %vm547, %v525, 0
        %v570 = vsel %vm547, %v526, 0
        %v573 = vsel %vm547, %v527, 0
        %v576 = vsel %vm547, %v528, 0
        %v579 = vsel %vm547, %v529, 0
        %v582 = vsel %vm547, %v530, 0
        %v585 = vsel %vm547, %v531, 0
        %v588 = vsel %vm547, %v532, 0
        %v591 = vsel %vm547, %v533, 0
        %v594 = vsel %vm547, %v534, 0
        %596 = vmatprep.subr.bf16.mxu0 0
        %597 = vmatpush1.bf16.msra.mxu0 0
        %598 = vmatprep.subr.bf16.mxu0 0
        %599 = vmatpush1.bf16.msra.mxu0 0
        %600 = vmatprep.subr.bf16.mxu0 0
        %601 = vmatpush1.bf16.msra.mxu0 0
        %602 = vmatprep.subr.bf16.mxu0 0
        %603 = vmatpush1.bf16.msra.mxu0 0
        %604 = vmatprep.subr.bf16.mxu0 0
        %605 = vmatpush1.bf16.msra.mxu0 0
        %606 = vmatprep.subr.bf16.mxu0 0
        %607 = vmatpush1.bf16.msra.mxu0 0
        %608 = vmatprep.subr.bf16.mxu0 0
        %609 = vmatpush1.bf16.msra.mxu0 %v544
        %610 = vmatprep.subr.bf16.mxu0 0
        %611 = vmatpush1.bf16.msra.mxu0 %v543
        %612 = vmatprep.subr.bf16.mxu0 0
        %613 = vmatpush2.bf16.msra.mxu0 0
        %614 = vmatprep.subr.bf16.mxu0 0
        %615 = vmatpush2.bf16.msra.mxu0 0
        %616 = vmatprep.subr.bf16.mxu0 0
        %617 = vmatpush2.bf16.msra.mxu0 0
        %618 = vmatprep.subr.bf16.mxu0 0
        %619 = vmatpush2.bf16.msra.mxu0 0
        %620 = vmatprep.subr.bf16.mxu0 0
        %621 = vmatpush2.bf16.msra.mxu0 0
        %622 = vmatprep.subr.bf16.mxu0 0
        %623 = vmatpush2.bf16.msra.mxu0 0
        %624 = vmatprep.subr.bf16.mxu0 0
        %625 = vmatpush2.bf16.msra.mxu0 0
        %626 = vmatprep.subr.bf16.mxu0 0
        %627 = vmatpush2.bf16.msra.mxu0 0
        %628 = vmatprep.mubr.bf16.mxu0 0
        %629 = vmatmul.mubr.bf16.gmra.mxu0 %v549
        %v630 = vpop.f32.mrf.mxu0
        %v631 = vadd.f32 0.0, %v630
        %v632 = vpop.f32.mrf.mxu0
        %v633 = vpop.f32.mrf.mxu0
        %v634 = vadd.f32 0.0, %v633
        %v635 = vpop.f32.mrf.mxu0
        %636 = vmatprep.mubr.bf16.mxu0 0
        %637 = vmatmul.mubr.bf16.gmra.mxu0 %v552
        %v638 = vpop.f32.mrf.mxu0
        %v639 = vadd.f32 0.0, %v638
        %v640 = vpop.f32.mrf.mxu0
        %v641 = vpop.f32.mrf.mxu0
        %v642 = vadd.f32 0.0, %v641
        %v643 = vpop.f32.mrf.mxu0
        %644 = vmatprep.mubr.bf16.mxu0 0
        %645 = vmatmul.mubr.bf16.gmra.mxu0 %v555
        %v646 = vpop.f32.mrf.mxu0
        %v647 = vadd.f32 0.0, %v646
        %v648 = vpop.f32.mrf.mxu0
        %v649 = vpop.f32.mrf.mxu0
        %v650 = vadd.f32 0.0, %v649
        %v651 = vpop.f32.mrf.mxu0
        %652 = vmatprep.mubr.bf16.mxu0 0
        %653 = vmatmul.mubr.bf16.gmra.mxu0 %v558
        %v654 = vpop.f32.mrf.mxu0
        %v655 = vadd.f32 0.0, %v654
        %v656 = vpop.f32.mrf.mxu0
        %v657 = vpop.f32.mrf.mxu0
        %v658 = vadd.f32 0.0, %v657
        %v659 = vpop.f32.mrf.mxu0
        %660 = vmatprep.mubr.bf16.mxu0 0
        %661 = vmatmul.mubr.bf16.gmra.mxu0 %v561
        %v662 = vpop.f32.mrf.mxu0
        %v663 = vadd.f32 0.0, %v662
        %v664 = vpop.f32.mrf.mxu0
        %v665 = vpop.f32.mrf.mxu0
        %v666 = vadd.f32 0.0, %v665
        %v667 = vpop.f32.mrf.mxu0
        %668 = vmatprep.mubr.bf16.mxu0 0
        %669 = vmatmul.mubr.bf16.gmra.mxu0 %v564
        %v670 = vpop.f32.mrf.mxu0
        %v671 = vadd.f32 0.0, %v670
        %v672 = vpop.f32.mrf.mxu0
        %v673 = vpop.f32.mrf.mxu0
        %v674 = vadd.f32 0.0, %v673
        %v675 = vpop.f32.mrf.mxu0
        %676 = vmatprep.mubr.bf16.mxu0 0
        %677 = vmatmul.mubr.bf16.gmra.mxu0 %v567
        %v678 = vpop.f32.mrf.mxu0
        %v679 = vadd.f32 0.0, %v678
        %v680 = vpop.f32.mrf.mxu0
        %v681 = vpop.f32.mrf.mxu0
        %v682 = vadd.f32 0.0, %v681
        %v683 = vpop.f32.mrf.mxu0
        %684 = vmatprep.mubr.bf16.mxu0 0
        %685 = vmatmul.mubr.bf16.gmra.mxu0 %v570
        %v686 = vpop.f32.mrf.mxu0
        %v687 = vadd.f32 0.0, %v686
        %v688 = vpop.f32.mrf.mxu0
        %v689 = vpop.f32.mrf.mxu0
        %v690 = vadd.f32 0.0, %v689
        %v691 = vpop.f32.mrf.mxu0
        %692 = vmatprep.mubr.bf16.mxu0 0
        %693 = vmatmul.mubr.bf16.gmra.mxu0 %v573
        %v694 = vpop.f32.mrf.mxu0
        %v695 = vadd.f32 0.0, %v694
        %v696 = vpop.f32.mrf.mxu0
        %v697 = vpop.f32.mrf.mxu0
        %v698 = vadd.f32 0.0, %v697
        %v699 = vpop.f32.mrf.mxu0
        %700 = vmatprep.mubr.bf16.mxu0 0
        %701 = vmatmul.mubr.bf16.gmra.mxu0 %v576
        %v702 = vpop.f32.mrf.mxu0
        %v703 = vadd.f32 0.0, %v702
        %v704 = vpop.f32.mrf.mxu0
        %v705 = vpop.f32.mrf.mxu0
        %v706 = vadd.f32 0.0, %v705
        %v707 = vpop.f32.mrf.mxu0
        %708 = vmatprep.mubr.bf16.mxu0 0
        %709 = vmatmul.mubr.bf16.gmra.mxu0 %v579
        %v710 = vpop.f32.mrf.mxu0
        %v711 = vadd.f32 0.0, %v710
        %v712 = vpop.f32.mrf.mxu0
        %v713 = vpop.f32.mrf.mxu0
        %v714 = vadd.f32 0.0, %v713
        %v715 = vpop.f32.mrf.mxu0
        %716 = vmatprep.mubr.bf16.mxu0 0
        %717 = vmatmul.mubr.bf16.gmra.mxu0 %v582
        %v718 = vpop.f32.mrf.mxu0
        %v719 = vadd.f32 0.0, %v718
        %v720 = vpop.f32.mrf.mxu0
        %v721 = vpop.f32.mrf.mxu0
        %v722 = vadd.f32 0.0, %v721
        %v723 = vpop.f32.mrf.mxu0
        %724 = vmatprep.mubr.bf16.mxu0 0
        %725 = vmatmul.mubr.bf16.gmra.mxu0 %v585
        %v726 = vpop.f32.mrf.mxu0
        %v727 = vadd.f32 0.0, %v726
        %v728 = vpop.f32.mrf.mxu0
        %v729 = vpop.f32.mrf.mxu0
        %v730 = vadd.f32 0.0, %v729
        %v731 = vpop.f32.mrf.mxu0
        %732 = vmatprep.mubr.bf16.mxu0 0
        %733 = vmatmul.mubr.bf16.gmra.mxu0 %v588
        %v734 = vpop.f32.mrf.mxu0
        %v735 = vadd.f32 0.0, %v734
        %v736 = vpop.f32.mrf.mxu0
        %v737 = vpop.f32.mrf.mxu0
        %v738 = vadd.f32 0.0, %v737
        %v739 = vpop.f32.mrf.mxu0
        %740 = vmatprep.mubr.bf16.mxu0 0
        %741 = vmatmul.mubr.bf16.gmra.mxu0 %v591
        %v742 = vpop.f32.mrf.mxu0
        %v743 = vadd.f32 0.0, %v742
        %v744 = vpop.f32.mrf.mxu0
        %v745 = vpop.f32.mrf.mxu0
        %v746 = vadd.f32 0.0, %v745
        %v747 = vpop.f32.mrf.mxu0
        %748 = vmatprep.mubr.bf16.mxu0 0
        %749 = vmatmul.mubr.bf16.gmra.mxu0 %v594
        %v750 = vpop.f32.mrf.mxu0
        %v751 = vadd.f32 0.0, %v750
        %v752 = vpop.f32.mrf.mxu0
        %v753 = vpop.f32.mrf.mxu0
        %v754 = vadd.f32 0.0, %v753
        %v755 = vpop.f32.mrf.mxu0
        %756 = vdwg.mxu0
        %v757 = vunpack.c.l.bf16 %v419
        %v758 = vunpack.c.l.bf16 %v420
        %v759 = vunpack.c.l.bf16 %v421
        %v760 = vunpack.c.l.bf16 %v422
        %v761 = vunpack.c.l.bf16 %v423
        %v762 = vunpack.c.l.bf16 %v424
        %v763 = vunpack.c.l.bf16 %v425
        %v764 = vunpack.c.l.bf16 %v426
        %v765 = vunpack.c.l.bf16 %v427
        %v766 = vunpack.c.l.bf16 %v428
        %v767 = vunpack.c.l.bf16 %v429
        %v768 = vunpack.c.l.bf16 %v430
        %v769 = vunpack.c.l.bf16 %v431
        %v770 = vunpack.c.l.bf16 %v432
        %v771 = vunpack.c.l.bf16 %v433
        %v772 = vunpack.c.l.bf16 %v434
        %v773 = vunpack.c.l.bf16 %v435
        %v774 = vunpack.c.l.bf16 %v436
        %v775 = vunpack.c.l.bf16 %v437
        %v776 = vunpack.c.l.bf16 %v438
        %v777 = vunpack.c.l.bf16 %v439
        %v778 = vunpack.c.l.bf16 %v440
        %v779 = vunpack.c.l.bf16 %v441
        %v780 = vunpack.c.l.bf16 %v442
        %v781 = vunpack.c.l.bf16 %v443
        %v782 = vunpack.c.l.bf16 %v444
        %v783 = vunpack.c.l.bf16 %v445
        %v784 = vunpack.c.l.bf16 %v446
        %v785 = vunpack.c.l.bf16 %v447
        %v786 = vunpack.c.l.bf16 %v448
        %v787 = vunpack.c.l.bf16 %v449
        %v788 = vunpack.c.l.bf16 %v450
        %v789 = vsel %vm547, %v757, 0.0
        %v790 = vsel %vm547, %v758, 0.0
        %v791 = vadd.f32 %v789, %v790
        %v792 = vsel %vm547, %v759, 0.0
        %v793 = vadd.f32 %v791, %v792
        %v794 = vsel %vm547, %v760, 0.0
        %v795 = vadd.f32 %v793, %v794
        %v796 = vrot.slane %v795, 4
        %v797 = vadd.f32 %v795, %v796
        %v798 = vrot.slane %v797, 2
        %v799 = vadd.f32 %v797, %v798
        %v800 = vrot.slane %v799, 1
        %v801 = vadd.f32 %v799, %v800
        %v802 = vsel %vm547, %v761, 0.0
        %v803 = vsel %vm547, %v762, 0.0
        %v804 = vadd.f32 %v802, %v803
        %v805 = vsel %vm547, %v763, 0.0
        %v806 = vadd.f32 %v804, %v805
        %v807 = vsel %vm547, %v764, 0.0
        %v808 = vadd.f32 %v806, %v807
        %v809 = vrot.slane %v808, 4
        %v810 = vadd.f32 %v808, %v809
        %v811 = vrot.slane %v810, 2
        %v812 = vadd.f32 %v810, %v811
        %v813 = vrot.slane %v812, 1
        %v814 = vadd.f32 %v812, %v813
        %v815 = vsel %vm547, %v765, 0.0
        %v816 = vsel %vm547, %v766, 0.0
        %v817 = vadd.f32 %v815, %v816
        %v818 = vsel %vm547, %v767, 0.0
        %v819 = vadd.f32 %v817, %v818
        %v820 = vsel %vm547, %v768, 0.0
        %v821 = vadd.f32 %v819, %v820
        %v822 = vrot.slane %v821, 4
        %v823 = vadd.f32 %v821, %v822
        %v824 = vrot.slane %v823, 2
        %v825 = vadd.f32 %v823, %v824
        %v826 = vrot.slane %v825, 1
        %v827 = vadd.f32 %v825, %v826
        %v828 = vsel %vm547, %v769, 0.0
        %v829 = vsel %vm547, %v770, 0.0
        %v830 = vadd.f32 %v828, %v829
        %v831 = vsel %vm547, %v771, 0.0
        %v832 = vadd.f32 %v830, %v831
        %v833 = vsel %vm547, %v772, 0.0
        %v834 = vadd.f32 %v832, %v833
        %v835 = vrot.slane %v834, 4
        %v836 = vadd.f32 %v834, %v835
        %v837 = vrot.slane %v836, 2
        %v838 = vadd.f32 %v836, %v837
        %v839 = vrot.slane %v838, 1
        %v840 = vadd.f32 %v838, %v839
        %v841 = vsel %vm547, %v773, 0.0
        %v842 = vsel %vm547, %v774, 0.0
        %v843 = vadd.f32 %v841, %v842
        %v844 = vsel %vm547, %v775, 0.0
        %v845 = vadd.f32 %v843, %v844
        %v846 = vsel %vm547, %v776, 0.0
        %v847 = vadd.f32 %v845, %v846
        %v848 = vrot.slane %v847, 4
        %v849 = vadd.f32 %v847, %v848
        %v850 = vrot.slane %v849, 2
        %v851 = vadd.f32 %v849, %v850
        %v852 = vrot.slane %v851, 1
        %v853 = vadd.f32 %v851, %v852
        %v854 = vsel %vm547, %v777, 0.0
        %v855 = vsel %vm547, %v778, 0.0
        %v856 = vadd.f32 %v854, %v855
        %v857 = vsel %vm547, %v779, 0.0
        %v858 = vadd.f32 %v856, %v857
        %v859 = vsel %vm547, %v780, 0.0
        %v860 = vadd.f32 %v858, %v859
        %v861 = vrot.slane %v860, 4
        %v862 = vadd.f32 %v860, %v861
        %v863 = vrot.slane %v862, 2
        %v864 = vadd.f32 %v862, %v863
        %v865 = vrot.slane %v864, 1
        %v866 = vadd.f32 %v864, %v865
        %v867 = vsel %vm547, %v781, 0.0
        %v868 = vsel %vm547, %v782, 0.0
        %v869 = vadd.f32 %v867, %v868
        %v870 = vsel %vm547, %v783, 0.0
        %v871 = vadd.f32 %v869, %v870
        %v872 = vsel %vm547, %v784, 0.0
        %v873 = vadd.f32 %v871, %v872
        %v874 = vrot.slane %v873, 4
        %v875 = vadd.f32 %v873, %v874
        %v876 = vrot.slane %v875, 2
        %v877 = vadd.f32 %v875, %v876
        %v878 = vrot.slane %v877, 1
        %v879 = vadd.f32 %v877, %v878
        %v880 = vsel %vm547, %v785, 0.0
        %v881 = vsel %vm547, %v786, 0.0
        %v882 = vadd.f32 %v880, %v881
        %v883 = vsel %vm547, %v787, 0.0
        %v884 = vadd.f32 %v882, %v883
        %v885 = vsel %vm547, %v788, 0.0
        %v886 = vadd.f32 %v884, %v885
        %v887 = vrot.slane %v886, 4
        %v888 = vadd.f32 %v886, %v887
        %v889 = vrot.slane %v888, 2
        %v890 = vadd.f32 %v888, %v889
        %v891 = vrot.slane %v890, 1
        %v892 = vadd.f32 %v890, %v891
        %v893 = vmul.f32 %v801, 0.04
        %v894 = vmul.f32 %v814, 0.04
        %v895 = vmul.f32 %v827, 0.04
        %v896 = vmul.f32 %v840, 0.04
        %v897 = vmul.f32 %v853, 0.04
        %v898 = vmul.f32 %v866, 0.04
        %v899 = vmul.f32 %v879, 0.04
        %v900 = vmul.f32 %v892, 0.04
        %vm901 = vcmask 523264
        %v902 = vsel %vm901, %v631, 0.0
        %v903 = vsel %vm901, %v634, 0.0
        %v904 = vadd.f32 %v902, %v903
        %v905 = vsel %vm901, %v639, 0.0
        %v906 = vadd.f32 %v904, %v905
        %v907 = vsel %vm901, %v642, 0.0
        %v908 = vadd.f32 %v906, %v907
        %v909 = vrot.slane %v908, 4
        %v910 = vadd.f32 %v908, %v909
        %v911 = vrot.slane %v910, 2
        %v912 = vadd.f32 %v910, %v911
        %v913 = vrot.slane %v912, 1
        %v914 = vadd.f32 %v912, %v913
        %v915 = vsel %vm901, %v647, 0.0
        %v916 = vsel %vm901, %v650, 0.0
        %v917 = vadd.f32 %v915, %v916
        %v918 = vsel %vm901, %v655, 0.0
        %v919 = vadd.f32 %v917, %v918
        %v920 = vsel %vm901, %v658, 0.0
        %v921 = vadd.f32 %v919, %v920
        %v922 = vrot.slane %v921, 4
        %v923 = vadd.f32 %v921, %v922
        %v924 = vrot.slane %v923, 2
        %v925 = vadd.f32 %v923, %v924
        %v926 = vrot.slane %v925, 1
        %v927 = vadd.f32 %v925, %v926
        %v928 = vsel %vm901, %v663, 0.0
        %v929 = vsel %vm901, %v666, 0.0
        %v930 = vadd.f32 %v928, %v929
        %v931 = vsel %vm901, %v671, 0.0
        %v932 = vadd.f32 %v930, %v931
        %v933 = vsel %vm901, %v674, 0.0
        %v934 = vadd.f32 %v932, %v933
        %v935 = vrot.slane %v934, 4
        %v936 = vadd.f32 %v934, %v935
        %v937 = vrot.slane %v936, 2
        %v938 = vadd.f32 %v936, %v937
        %v939 = vrot.slane %v938, 1
        %v940 = vadd.f32 %v938, %v939
        %v941 = vsel %vm901, %v679, 0.0
        %v942 = vsel %vm901, %v682, 0.0
        %v943 = vadd.f32 %v941, %v942
        %v944 = vsel %vm901, %v687, 0.0
        %v945 = vadd.f32 %v943, %v944
        %v946 = vsel %vm901, %v690, 0.0
        %v947 = vadd.f32 %v945, %v946
        %v948 = vrot.slane %v947, 4
        %v949 = vadd.f32 %v947, %v948
        %v950 = vrot.slane %v949, 2
        %v951 = vadd.f32 %v949, %v950
        %v952 = vrot.slane %v951, 1
        %v953 = vadd.f32 %v951, %v952
        %v954 = vsel %vm901, %v695, 0.0
        %v955 = vsel %vm901, %v698, 0.0
        %v956 = vadd.f32 %v954, %v955
        %v957 = vsel %vm901, %v703, 0.0
        %v958 = vadd.f32 %v956, %v957
        %v959 = vsel %vm901, %v706, 0.0
        %v960 = vadd.f32 %v958, %v959
        %v961 = vrot.slane %v960, 4
        %v962 = vadd.f32 %v960, %v961
        %v963 = vrot.slane %v962, 2
        %v964 = vadd.f32 %v962, %v963
        %v965 = vrot.slane %v964, 1
        %v966 = vadd.f32 %v964, %v965
        %v967 = vsel %vm901, %v711, 0.0
        %v968 = vsel %vm901, %v714, 0.0
        %v969 = vadd.f32 %v967, %v968
        %v970 = vsel %vm901, %v719, 0.0
        %v971 = vadd.f32 %v969, %v970
        %v972 = vsel %vm901, %v722, 0.0
        %v973 = vadd.f32 %v971, %v972
        %v974 = vrot.slane %v973, 4
        %v975 = vadd.f32 %v973, %v974
        %v976 = vrot.slane %v975, 2
        %v977 = vadd.f32 %v975, %v976
        %v978 = vrot.slane %v977, 1
        %v979 = vadd.f32 %v977, %v978
        %v980 = vsel %vm901, %v727, 0.0
        %v981 = vsel %vm901, %v730, 0.0
        %v982 = vadd.f32 %v980, %v981
        %v983 = vsel %vm901, %v735, 0.0
        %v984 = vadd.f32 %v982, %v983
        %v985 = vsel %vm901, %v738, 0.0
        %v986 = vadd.f32 %v984, %v985
        %v987 = vrot.slane %v986, 4
        %v988 = vadd.f32 %v986, %v987
        %v989 = vrot.slane %v988, 2
        %v990 = vadd.f32 %v988, %v989
        %v991 = vrot.slane %v990, 1
        %v992 = vadd.f32 %v990, %v991
        %v993 = vsel %vm901, %v743, 0.0
        %v994 = vsel %vm901, %v746, 0.0
        %v995 = vadd.f32 %v993, %v994
        %v996 = vsel %vm901, %v751, 0.0
        %v997 = vadd.f32 %v995, %v996
        %v998 = vsel %vm901, %v754, 0.0
        %v999 = vadd.f32 %v997, %v998
        %v1000 = vrot.slane %v999, 4
        %v1001 = vadd.f32 %v999, %v1000
        %v1002 = vrot.slane %v1001, 2
        %v1003 = vadd.f32 %v1001, %v1002
        %v1004 = vrot.slane %v1003, 1
        %v1005 = vadd.f32 %v1003, %v1004
        %v1006 = vmul.f32 %v914, 0.04
        %v1007 = vmul.f32 %v927, 0.04
        %v1008 = vmul.f32 %v940, 0.04
        %v1009 = vmul.f32 %v953, 0.04
        %v1010 = vmul.f32 %v966, 0.04
        %v1011 = vmul.f32 %v979, 0.04
        %v1012 = vmul.f32 %v992, 0.04
        %v1013 = vmul.f32 %v1005, 0.04
        %v1014 = vld [vmem:[#allocation7] sm:$0x1]
        %v1016 = vlaneseq
        %v1017 = vshrl.u32 %v1016, 7
        %v1018 = vsub.s32 0, %v1017
        %v1019 = vrot.slane %v1014, %v1018
        %v1021 = vadd.f32 %v1006, %v1019
        %v1022 = vadd.f32 %v1007, %v1019
        %v1023 = vadd.f32 %v1008, %v1019
        %v1024 = vadd.f32 %v1009, %v1019
        %v1025 = vadd.f32 %v1010, %v1019
        %v1026 = vadd.f32 %v1011, %v1019
        %v1027 = vadd.f32 %v1012, %v1019
        %v1028 = vadd.f32 %v1013, %v1019
        %v1029 = vld [vmem:[%s1] sm:$0xff]
        %v1030 = vld [vmem:[%s1 + $0x8] sm:$0xff]
        %v1031 = vld [vmem:[%s1 + $0x10] sm:$0xff]
        %v1032 = vld [vmem:[%s1 + $0x18] sm:$0xff]
        %v1033 = vadd.f32 %v631, %v1029
        %v1034 = vadd.f32 %v634, %v1030
        %v1035 = vadd.f32 %v639, %v1031
        %v1036 = vadd.f32 %v642, %v1032
        %v1037 = vadd.f32 %v647, %v1029
        %v1038 = vadd.f32 %v650, %v1030
        %v1039 = vadd.f32 %v655, %v1031
        %v1040 = vadd.f32 %v658, %v1032
        %v1041 = vadd.f32 %v663, %v1029
        %v1042 = vadd.f32 %v666, %v1030
        %v1043 = vadd.f32 %v671, %v1031
        %v1044 = vadd.f32 %v674, %v1032
        %v1045 = vadd.f32 %v679, %v1029
        %v1046 = vadd.f32 %v682, %v1030
        %v1047 = vadd.f32 %v687, %v1031
        %v1048 = vadd.f32 %v690, %v1032
        %v1049 = vadd.f32 %v695, %v1029
        %v1050 = vadd.f32 %v698, %v1030
        %v1051 = vadd.f32 %v703, %v1031
        %v1052 = vadd.f32 %v706, %v1032
        %v1053 = vadd.f32 %v711, %v1029
        %v1054 = vadd.f32 %v714, %v1030
        %v1055 = vadd.f32 %v719, %v1031
        %v1056 = vadd.f32 %v722, %v1032
        %v1057 = vadd.f32 %v727, %v1029
        %v1058 = vadd.f32 %v730, %v1030
        %v1059 = vadd.f32 %v735, %v1031
        %v1060 = vadd.f32 %v738, %v1032
        %v1061 = vadd.f32 %v743, %v1029
        %v1062 = vadd.f32 %v746, %v1030
        %v1063 = vadd.f32 %v751, %v1031
        %v1064 = vadd.f32 %v754, %v1032
        %v1065 = vpack.c.bf16 %v893, %v893
        %v1066 = vpack.c.bf16 %v894, %v894
        %v1067 = vpack.c.bf16 %v895, %v895
        %v1068 = vpack.c.bf16 %v896, %v896
        %v1069 = vpack.c.bf16 %v897, %v897
        %v1070 = vpack.c.bf16 %v898, %v898
        %v1071 = vpack.c.bf16 %v899, %v899
        %v1072 = vpack.c.bf16 %v900, %v900
        %v1073 = vld [vmem:[%s4] sm:$0xf]
        %v1074 = vld [vmem:[%s4 + $0x4] sm:$0xf]
        %v1075 = vld [vmem:[%s4 + $0x8] sm:$0xf]
        %v1076 = vld [vmem:[%s4 + $0xc] sm:$0xf]
        %v1077 = vld [vmem:[#allocation5] sm:$0x1]
        %v1079 = vlaneseq
        %v1080 = vshrl.u32 %v1079, 7
        %v1081 = vsub.s32 0, %v1080
        %v1082 = vrot.slane %v1077, %v1081
        %v1092 = vunpack.c.l.b16 %v1065
        %v1093 = vunpack.c.l.b16 %v1066
        %v1094 = vunpack.c.l.b16 %v1067
        %v1095 = vunpack.c.l.b16 %v1068
        %v1096 = vunpack.c.l.b16 %v1069
        %v1097 = vunpack.c.l.b16 %v1070
        %v1098 = vunpack.c.l.b16 %v1071
        %v1099 = vunpack.c.l.b16 %v1072
        %vm1100 = vcmask 1041409
        %v1101 = vsel %vm1100, %v1093, %v1092
        %vm1102 = vcmask 1042434
        %v1103 = vsel %vm1102, %v1094, %v1101
        %vm1104 = vcmask 1043459
        %v1105 = vsel %vm1104, %v1095, %v1103
        %vm1106 = vcmask 1044484
        %v1107 = vsel %vm1106, %v1096, %v1105
        %vm1108 = vcmask 1045509
        %v1109 = vsel %vm1108, %v1097, %v1107
        %vm1110 = vcmask 1046534
        %v1111 = vsel %vm1110, %v1098, %v1109
        %vm1112 = vcmask 1047559
        %v1113 = vsel %vm1112, %v1099, %v1111
        %v1114 = vpack.c.b16 %v1113, %v1113
        %v1119 = vunpack.c.l.b16 %v1073
        %v1120 = vunpack.c.l.b16 %v1074
        %v1121 = vunpack.c.l.b16 %v1075
        %v1122 = vunpack.c.l.b16 %v1076
        %v1123 = vpack.c.b16 %v1120, %v1119
        %v1124 = vpack.c.b16 %v1122, %v1121
        %v1128 = vsel %vm547, %v1114, 0
        %1130 = vmatprep.subr.bf16.mxu0 0
        %1131 = vmatpush1.bf16.msra.mxu0 0
        %1132 = vmatprep.subr.bf16.mxu0 0
        %1133 = vmatpush1.bf16.msra.mxu0 0
        %1134 = vmatprep.subr.bf16.mxu0 0
        %1135 = vmatpush1.bf16.msra.mxu0 0
        %1136 = vmatprep.subr.bf16.mxu0 0
        %1137 = vmatpush1.bf16.msra.mxu0 0
        %1138 = vmatprep.subr.bf16.mxu0 0
        %1139 = vmatpush1.bf16.msra.mxu0 0
        %1140 = vmatprep.subr.bf16.mxu0 0
        %1141 = vmatpush1.bf16.msra.mxu0 0
        %1142 = vmatprep.subr.bf16.mxu0 0
        %1143 = vmatpush1.bf16.msra.mxu0 %v1124
        %1144 = vmatprep.subr.bf16.mxu0 0
        %1145 = vmatpush1.bf16.msra.mxu0 %v1123
        %1146 = vmatprep.subr.bf16.mxu0 0
        %1147 = vmatpush2.bf16.msra.mxu0 0
        %1148 = vmatprep.subr.bf16.mxu0 0
        %1149 = vmatpush2.bf16.msra.mxu0 0
        %1150 = vmatprep.subr.bf16.mxu0 0
        %1151 = vmatpush2.bf16.msra.mxu0 0
        %1152 = vmatprep.subr.bf16.mxu0 0
        %1153 = vmatpush2.bf16.msra.mxu0 0
        %1154 = vmatprep.subr.bf16.mxu0 0
        %1155 = vmatpush2.bf16.msra.mxu0 0
        %1156 = vmatprep.subr.bf16.mxu0 0
        %1157 = vmatpush2.bf16.msra.mxu0 0
        %1158 = vmatprep.subr.bf16.mxu0 0
        %1159 = vmatpush2.bf16.msra.mxu0 0
        %1160 = vmatprep.subr.bf16.mxu0 0
        %1161 = vmatpush2.bf16.msra.mxu0 0
        %1162 = vmatprep.mubr.bf16.mxu0 0
        %1163 = vmatmul.mubr.bf16.gmra.mxu0 %v1128
        %v1164 = vpop.f32.mrf.mxu0
        %v1165 = vadd.f32 %v1082, %v1164
        %v1166 = vpop.f32.mrf.mxu0
        %v1167 = vpop.f32.mrf.mxu0
        %v1168 = vpop.f32.mrf.mxu0
        %1169 = vdwg.mxu0
        %v1170 = vld [vmem:[%s8] sm:$0xff]
        %v1171 = vld [vmem:[%s8 + $0x8] sm:$0xff]
        %v1172 = vld [vmem:[%s8 + $0x10] sm:$0xff]
        %v1173 = vld [vmem:[%s8 + $0x18] sm:$0xff]
        %v1174 = vld [vmem:[%s9] sm:$0xf]
        %v1176 = vcombine.high %v1165, %v1165
        %v1178 = vunpack.c.l.s4 1966171168
        %v1179 = vunpack.c.0.s8 %v1178
        %v1180 = vlaneseq
        %v1181 = vshrl.u32 %v1180, 7
        %v1182 = vsub.s32 %v1179, %v1181
        %v1183 = vrot.slane %v1165, %v1182
        %v1185 = vunpack.c.l.s4 1966171168
        %v1186 = vunpack.c.0.s8 %v1185
        %v1187 = vlaneseq
        %v1188 = vshrl.u32 %v1187, 7
        %v1189 = vsub.s32 %v1186, %v1188
        %v1190 = vrot.slane %v1176, %v1189
        %v1191 = vcombine.high %v1183, %v1183
        %v1192 = vcombine.high %v1190, %v1190
        %v1194 = vunpack.c.l.s4 1966171168
        %v1195 = vunpack.c.0.s8 %v1194
        %v1196 = vlaneseq
        %v1197 = vshrl.u32 %v1196, 7
        %v1198 = vsub.s32 %v1195, %v1197
        %v1199 = vrot.slane %v1183, %v1198
        %v1201 = vunpack.c.l.s4 1966171168
        %v1202 = vunpack.c.0.s8 %v1201
        %v1203 = vlaneseq
        %v1204 = vshrl.u32 %v1203, 7
        %v1205 = vsub.s32 %v1202, %v1204
        %v1206 = vrot.slane %v1190, %v1205
        %v1208 = vunpack.c.l.s4 1966171168
        %v1209 = vunpack.c.0.s8 %v1208
        %v1210 = vlaneseq
        %v1211 = vshrl.u32 %v1210, 7
        %v1212 = vsub.s32 %v1209, %v1211
        %v1213 = vrot.slane %v1191, %v1212
        %v1215 = vunpack.c.l.s4 1966171168
        %v1216 = vunpack.c.0.s8 %v1215
        %v1217 = vlaneseq
        %v1218 = vshrl.u32 %v1217, 7
        %v1219 = vsub.s32 %v1216, %v1218
        %v1220 = vrot.slane %v1192, %v1219
        %v1221 = vcombine.high %v1199, %v1199
        %v1222 = vcombine.high %v1206, %v1206
        %v1223 = vcombine.high %v1213, %v1213
        %v1224 = vcombine.high %v1220, %v1220
        %v1225 = vlaneseq
        %v1226 = vshrl.u32 %v1225, 7
        %v1227 = vsub.s32 0, %v1226
        %v1228 = vrot.slane %v1199, %v1227
        %v1229 = vlaneseq
        %v1230 = vshrl.u32 %v1229, 7
        %v1231 = vsub.s32 0, %v1230
        %v1232 = vrot.slane %v1213, %v1231
        %v1233 = vlaneseq
        %v1234 = vshrl.u32 %v1233, 7
        %v1235 = vsub.s32 0, %v1234
        %v1236 = vrot.slane %v1221, %v1235
        %v1237 = vlaneseq
        %v1238 = vshrl.u32 %v1237, 7
        %v1239 = vsub.s32 0, %v1238
        %v1240 = vrot.slane %v1223, %v1239
        %v1241 = vlaneseq
        %v1242 = vshrl.u32 %v1241, 7
        %v1243 = vsub.s32 0, %v1242
        %v1244 = vrot.slane %v1206, %v1243
        %v1245 = vlaneseq
        %v1246 = vshrl.u32 %v1245, 7
        %v1247 = vsub.s32 0, %v1246
        %v1248 = vrot.slane %v1220, %v1247
        %v1249 = vlaneseq
        %v1250 = vshrl.u32 %v1249, 7
        %v1251 = vsub.s32 0, %v1250
        %v1252 = vrot.slane %v1222, %v1251
        %v1253 = vlaneseq
        %v1254 = vshrl.u32 %v1253, 7
        %v1255 = vsub.s32 0, %v1254
        %v1256 = vrot.slane %v1224, %v1255
        %v1265 = vmul.f32 %v1033, %v1228
        %v1266 = vmul.f32 %v1034, %v1228
        %v1267 = vmul.f32 %v1035, %v1228
        %v1268 = vmul.f32 %v1036, %v1228
        %v1269 = vmul.f32 %v1037, %v1232
        %v1270 = vmul.f32 %v1038, %v1232
        %v1271 = vmul.f32 %v1039, %v1232
        %v1272 = vmul.f32 %v1040, %v1232
        %v1273 = vmul.f32 %v1041, %v1236
        %v1274 = vmul.f32 %v1042, %v1236
        %v1275 = vmul.f32 %v1043, %v1236
        %v1276 = vmul.f32 %v1044, %v1236
        %v1277 = vmul.f32 %v1045, %v1240
        %v1278 = vmul.f32 %v1046, %v1240
        %v1279 = vmul.f32 %v1047, %v1240
        %v1280 = vmul.f32 %v1048, %v1240
        %v1281 = vmul.f32 %v1049, %v1244
        %v1282 = vmul.f32 %v1050, %v1244
        %v1283 = vmul.f32 %v1051, %v1244
        %v1284 = vmul.f32 %v1052, %v1244
        %v1285 = vmul.f32 %v1053, %v1248
        %v1286 = vmul.f32 %v1054, %v1248
        %v1287 = vmul.f32 %v1055, %v1248
        %v1288 = vmul.f32 %v1056, %v1248
        %v1289 = vmul.f32 %v1057, %v1252
        %v1290 = vmul.f32 %v1058, %v1252
        %v1291 = vmul.f32 %v1059, %v1252
        %v1292 = vmul.f32 %v1060, %v1252
        %v1293 = vmul.f32 %v1061, %v1256
        %v1294 = vmul.f32 %v1062, %v1256
        %v1295 = vmul.f32 %v1063, %v1256
        %v1296 = vmul.f32 %v1064, %v1256
        %v1298 = vsel %vm547, %v1265, 0
        %v1301 = vsel %vm547, %v1266, 0
        %v1304 = vsel %vm547, %v1267, 0
        %v1307 = vsel %vm547, %v1268, 0
        %v1310 = vsel %vm547, %v1269, 0
        %v1313 = vsel %vm547, %v1270, 0
        %v1316 = vsel %vm547, %v1271, 0
        %v1319 = vsel %vm547, %v1272, 0
        %v1322 = vsel %vm547, %v1273, 0
        %v1325 = vsel %vm547, %v1274, 0
        %v1328 = vsel %vm547, %v1275, 0
        %v1331 = vsel %vm547, %v1276, 0
        %v1334 = vsel %vm547, %v1277, 0
        %v1337 = vsel %vm547, %v1278, 0
        %v1340 = vsel %vm547, %v1279, 0
        %v1343 = vsel %vm547, %v1280, 0
        %v1346 = vsel %vm547, %v1281, 0
        %v1349 = vsel %vm547, %v1282, 0
        %v1352 = vsel %vm547, %v1283, 0
        %v1355 = vsel %vm547, %v1284, 0
        %v1358 = vsel %vm547, %v1285, 0
        %v1361 = vsel %vm547, %v1286, 0
        %v1364 = vsel %vm547, %v1287, 0
        %v1367 = vsel %vm547, %v1288, 0
        %v1370 = vsel %vm547, %v1289, 0
        %v1373 = vsel %vm547, %v1290, 0
        %v1376 = vsel %vm547, %v1291, 0
        %v1379 = vsel %vm547, %v1292, 0
        %v1382 = vsel %vm547, %v1293, 0
        %v1385 = vsel %vm547, %v1294, 0
        %v1388 = vsel %vm547, %v1295, 0
        %v1391 = vsel %vm547, %v1296, 0
        %1393 = vmatprep.subr.mxu0 0.0
        %1394 = vmatpush1.msra.mxu0 0.0
        %1395 = vmatprep.subr.mxu0 0.0
        %1396 = vmatpush1.msra.mxu0 0.0
        %1397 = vmatprep.subr.mxu0 0.0
        %1398 = vmatpush1.msra.mxu0 0.0
        %1399 = vmatprep.subr.mxu0 0.0
        %1400 = vmatpush1.msra.mxu0 0.0
        %1401 = vmatprep.subr.mxu0 0.0
        %1402 = vmatpush1.msra.mxu0 0.0
        %1403 = vmatprep.subr.mxu0 0.0
        %1404 = vmatpush1.msra.mxu0 0.0
        %1405 = vmatprep.subr.mxu0 0.0
        %1406 = vmatpush1.msra.mxu0 0.0
        %1407 = vmatprep.subr.mxu0 0.0
        %1408 = vmatpush1.msra.mxu0 0.0
        %1409 = vmatprep.subr.mxu0 0.0
        %1410 = vmatpush1.msra.mxu0 0.0
        %1411 = vmatprep.subr.mxu0 0.0
        %1412 = vmatpush1.msra.mxu0 0.0
        %1413 = vmatprep.subr.mxu0 0.0
        %1414 = vmatpush1.msra.mxu0 0.0
        %1415 = vmatprep.subr.mxu0 0.0
        %1416 = vmatpush1.msra.mxu0 0.0
        %1417 = vmatprep.subr.mxu0 0.0
        %1418 = vmatpush1.msra.mxu0 %v1173
        %1419 = vmatprep.subr.mxu0 0.0
        %1420 = vmatpush1.msra.mxu0 %v1172
        %1421 = vmatprep.subr.mxu0 0.0
        %1422 = vmatpush1.msra.mxu0 %v1171
        %1423 = vmatprep.subr.mxu0 0.0
        %1424 = vmatpush1.msra.mxu0 %v1170
        %1425 = vmatprep.subr.mxu0 0.0
        %1426 = vmatpush2.msra.mxu0 0.0
        %1427 = vmatprep.subr.mxu0 0.0
        %1428 = vmatpush2.msra.mxu0 0.0
        %1429 = vmatprep.subr.mxu0 0.0
        %1430 = vmatpush2.msra.mxu0 0.0
        %1431 = vmatprep.subr.mxu0 0.0
        %1432 = vmatpush2.msra.mxu0 0.0
        %1433 = vmatprep.subr.mxu0 0.0
        %1434 = vmatpush2.msra.mxu0 0.0
        %1435 = vmatprep.subr.mxu0 0.0
        %1436 = vmatpush2.msra.mxu0 0.0
        %1437 = vmatprep.subr.mxu0 0.0
        %1438 = vmatpush2.msra.mxu0 0.0
        %1439 = vmatprep.subr.mxu0 0.0
        %1440 = vmatpush2.msra.mxu0 0.0
        %1441 = vmatprep.subr.mxu0 0.0
        %1442 = vmatpush2.msra.mxu0 0.0
        %1443 = vmatprep.subr.mxu0 0.0
        %1444 = vmatpush2.msra.mxu0 0.0
        %1445 = vmatprep.subr.mxu0 0.0
        %1446 = vmatpush2.msra.mxu0 0.0
        %1447 = vmatprep.subr.mxu0 0.0
        %1448 = vmatpush2.msra.mxu0 0.0
        %1449 = vmatprep.subr.mxu0 0.0
        %1450 = vmatpush2.msra.mxu0 0.0
        %1451 = vmatprep.subr.mxu0 0.0
        %1452 = vmatpush2.msra.mxu0 0.0
        %1453 = vmatprep.subr.mxu0 0.0
        %1454 = vmatpush2.msra.mxu0 0.0
        %1455 = vmatprep.subr.mxu0 0.0
        %1456 = vmatpush2.msra.mxu0 0.0
        %1457 = vmatprep.mubr.f32.mxu0 0.0
        %1458 = vmatmul.mubr.f32.gmra.mxu0 %v1298
        %v1459 = vpop.f32.mrf.mxu0
        %v1460 = vadd.f32 0.0, %v1459
        %v1461 = vpop.f32.mrf.mxu0
        %1462 = vmatprep.mubr.f32.mxu0 0.0
        %1463 = vmatmul.mubr.f32.gmra.mxu0 %v1301
        %v1464 = vpop.f32.mrf.mxu0
        %v1465 = vadd.f32 0.0, %v1464
        %v1466 = vpop.f32.mrf.mxu0
        %1467 = vmatprep.mubr.f32.mxu0 0.0
        %1468 = vmatmul.mubr.f32.gmra.mxu0 %v1304
        %v1469 = vpop.f32.mrf.mxu0
        %v1470 = vadd.f32 0.0, %v1469
        %v1471 = vpop.f32.mrf.mxu0
        %1472 = vmatprep.mubr.f32.mxu0 0.0
        %1473 = vmatmul.mubr.f32.gmra.mxu0 %v1307
        %v1474 = vpop.f32.mrf.mxu0
        %v1475 = vadd.f32 0.0, %v1474
        %v1476 = vpop.f32.mrf.mxu0
        %1477 = vmatprep.mubr.f32.mxu0 0.0
        %1478 = vmatmul.mubr.f32.gmra.mxu0 %v1310
        %v1479 = vpop.f32.mrf.mxu0
        %v1480 = vadd.f32 0.0, %v1479
        %v1481 = vpop.f32.mrf.mxu0
        %1482 = vmatprep.mubr.f32.mxu0 0.0
        %1483 = vmatmul.mubr.f32.gmra.mxu0 %v1313
        %v1484 = vpop.f32.mrf.mxu0
        %v1485 = vadd.f32 0.0, %v1484
        %v1486 = vpop.f32.mrf.mxu0
        %1487 = vmatprep.mubr.f32.mxu0 0.0
        %1488 = vmatmul.mubr.f32.gmra.mxu0 %v1316
        %v1489 = vpop.f32.mrf.mxu0
        %v1490 = vadd.f32 0.0, %v1489
        %v1491 = vpop.f32.mrf.mxu0
        %1492 = vmatprep.mubr.f32.mxu0 0.0
        %1493 = vmatmul.mubr.f32.gmra.mxu0 %v1319
        %v1494 = vpop.f32.mrf.mxu0
        %v1495 = vadd.f32 0.0, %v1494
        %v1496 = vpop.f32.mrf.mxu0
        %1497 = vmatprep.mubr.f32.mxu0 0.0
        %1498 = vmatmul.mubr.f32.gmra.mxu0 %v1322
        %v1499 = vpop.f32.mrf.mxu0
        %v1500 = vadd.f32 0.0, %v1499
        %v1501 = vpop.f32.mrf.mxu0
        %1502 = vmatprep.mubr.f32.mxu0 0.0
        %1503 = vmatmul.mubr.f32.gmra.mxu0 %v1325
        %v1504 = vpop.f32.mrf.mxu0
        %v1505 = vadd.f32 0.0, %v1504
        %v1506 = vpop.f32.mrf.mxu0
        %1507 = vmatprep.mubr.f32.mxu0 0.0
        %1508 = vmatmul.mubr.f32.gmra.mxu0 %v1328
        %v1509 = vpop.f32.mrf.mxu0
        %v1510 = vadd.f32 0.0, %v1509
        %v1511 = vpop.f32.mrf.mxu0
        %1512 = vmatprep.mubr.f32.mxu0 0.0
        %1513 = vmatmul.mubr.f32.gmra.mxu0 %v1331
        %v1514 = vpop.f32.mrf.mxu0
        %v1515 = vadd.f32 0.0, %v1514
        %v1516 = vpop.f32.mrf.mxu0
        %1517 = vmatprep.mubr.f32.mxu0 0.0
        %1518 = vmatmul.mubr.f32.gmra.mxu0 %v1334
        %v1519 = vpop.f32.mrf.mxu0
        %v1520 = vadd.f32 0.0, %v1519
        %v1521 = vpop.f32.mrf.mxu0
        %1522 = vmatprep.mubr.f32.mxu0 0.0
        %1523 = vmatmul.mubr.f32.gmra.mxu0 %v1337
        %v1524 = vpop.f32.mrf.mxu0
        %v1525 = vadd.f32 0.0, %v1524
        %v1526 = vpop.f32.mrf.mxu0
        %1527 = vmatprep.mubr.f32.mxu0 0.0
        %1528 = vmatmul.mubr.f32.gmra.mxu0 %v1340
        %v1529 = vpop.f32.mrf.mxu0
        %v1530 = vadd.f32 0.0, %v1529
        %v1531 = vpop.f32.mrf.mxu0
        %1532 = vmatprep.mubr.f32.mxu0 0.0
        %1533 = vmatmul.mubr.f32.gmra.mxu0 %v1343
        %v1534 = vpop.f32.mrf.mxu0
        %v1535 = vadd.f32 0.0, %v1534
        %v1536 = vpop.f32.mrf.mxu0
        %1537 = vmatprep.mubr.f32.mxu0 0.0
        %1538 = vmatmul.mubr.f32.gmra.mxu0 %v1346
        %v1539 = vpop.f32.mrf.mxu0
        %v1540 = vadd.f32 0.0, %v1539
        %v1541 = vpop.f32.mrf.mxu0
        %1542 = vmatprep.mubr.f32.mxu0 0.0
        %1543 = vmatmul.mubr.f32.gmra.mxu0 %v1349
        %v1544 = vpop.f32.mrf.mxu0
        %v1545 = vadd.f32 0.0, %v1544
        %v1546 = vpop.f32.mrf.mxu0
        %1547 = vmatprep.mubr.f32.mxu0 0.0
        %1548 = vmatmul.mubr.f32.gmra.mxu0 %v1352
        %v1549 = vpop.f32.mrf.mxu0
        %v1550 = vadd.f32 0.0, %v1549
        %v1551 = vpop.f32.mrf.mxu0
        %1552 = vmatprep.mubr.f32.mxu0 0.0
        %1553 = vmatmul.mubr.f32.gmra.mxu0 %v1355
        %v1554 = vpop.f32.mrf.mxu0
        %v1555 = vadd.f32 0.0, %v1554
        %v1556 = vpop.f32.mrf.mxu0
        %1557 = vmatprep.mubr.f32.mxu0 0.0
        %1558 = vmatmul.mubr.f32.gmra.mxu0 %v1358
        %v1559 = vpop.f32.mrf.mxu0
        %v1560 = vadd.f32 0.0, %v1559
        %v1561 = vpop.f32.mrf.mxu0
        %1562 = vmatprep.mubr.f32.mxu0 0.0
        %1563 = vmatmul.mubr.f32.gmra.mxu0 %v1361
        %v1564 = vpop.f32.mrf.mxu0
        %v1565 = vadd.f32 0.0, %v1564
        %v1566 = vpop.f32.mrf.mxu0
        %1567 = vmatprep.mubr.f32.mxu0 0.0
        %1568 = vmatmul.mubr.f32.gmra.mxu0 %v1364
        %v1569 = vpop.f32.mrf.mxu0
        %v1570 = vadd.f32 0.0, %v1569
        %v1571 = vpop.f32.mrf.mxu0
        %1572 = vmatprep.mubr.f32.mxu0 0.0
        %1573 = vmatmul.mubr.f32.gmra.mxu0 %v1367
        %v1574 = vpop.f32.mrf.mxu0
        %v1575 = vadd.f32 0.0, %v1574
        %v1576 = vpop.f32.mrf.mxu0
        %1577 = vmatprep.mubr.f32.mxu0 0.0
        %1578 = vmatmul.mubr.f32.gmra.mxu0 %v1370
        %v1579 = vpop.f32.mrf.mxu0
        %v1580 = vadd.f32 0.0, %v1579
        %v1581 = vpop.f32.mrf.mxu0
        %1582 = vmatprep.mubr.f32.mxu0 0.0
        %1583 = vmatmul.mubr.f32.gmra.mxu0 %v1373
        %v1584 = vpop.f32.mrf.mxu0
        %v1585 = vadd.f32 0.0, %v1584
        %v1586 = vpop.f32.mrf.mxu0
        %1587 = vmatprep.mubr.f32.mxu0 0.0
        %1588 = vmatmul.mubr.f32.gmra.mxu0 %v1376
        %v1589 = vpop.f32.mrf.mxu0
        %v1590 = vadd.f32 0.0, %v1589
        %v1591 = vpop.f32.mrf.mxu0
        %1592 = vmatprep.mubr.f32.mxu0 0.0
        %1593 = vmatmul.mubr.f32.gmra.mxu0 %v1379
        %v1594 = vpop.f32.mrf.mxu0
        %v1595 = vadd.f32 0.0, %v1594
        %v1596 = vpop.f32.mrf.mxu0
        %1597 = vmatprep.mubr.f32.mxu0 0.0
        %1598 = vmatmul.mubr.f32.gmra.mxu0 %v1382
        %v1599 = vpop.f32.mrf.mxu0
        %v1600 = vadd.f32 0.0, %v1599
        %v1601 = vpop.f32.mrf.mxu0
        %1602 = vmatprep.mubr.f32.mxu0 0.0
        %1603 = vmatmul.mubr.f32.gmra.mxu0 %v1385
        %v1604 = vpop.f32.mrf.mxu0
        %v1605 = vadd.f32 0.0, %v1604
        %v1606 = vpop.f32.mrf.mxu0
        %1607 = vmatprep.mubr.f32.mxu0 0.0
        %1608 = vmatmul.mubr.f32.gmra.mxu0 %v1388
        %v1609 = vpop.f32.mrf.mxu0
        %v1610 = vadd.f32 0.0, %v1609
        %v1611 = vpop.f32.mrf.mxu0
        %1612 = vmatprep.mubr.f32.mxu0 0.0
        %1613 = vmatmul.mubr.f32.gmra.mxu0 %v1391
        %v1614 = vpop.f32.mrf.mxu0
        %v1615 = vadd.f32 0.0, %v1614
        %v1616 = vpop.f32.mrf.mxu0
        %1617 = vdwg.mxu0
        %v1626 = vrot.slane %v1022, 7
        %v1627 = vsel %vm1100, %v1626, %v1021
        %v1628 = vrot.slane %v1023, 6
        %v1629 = vsel %vm1102, %v1628, %v1627
        %v1630 = vrot.slane %v1024, 5
        %v1631 = vsel %vm1104, %v1630, %v1629
        %v1632 = vrot.slane %v1025, 4
        %v1633 = vsel %vm1106, %v1632, %v1631
        %v1634 = vrot.slane %v1026, 3
        %v1635 = vsel %vm1108, %v1634, %v1633
        %v1636 = vrot.slane %v1027, 2
        %v1637 = vsel %vm1110, %v1636, %v1635
        %v1638 = vrot.slane %v1028, 1
        %v1639 = vsel %vm1112, %v1638, %v1637
        %v1641 = vmul.f32 %v1165, %v1639
        %v1643 = vsel %vm547, %v1641, 0
        %1645 = vmatprep.subr.mxu0 0.0
        %1646 = vmatpush1.msra.mxu0 0.0
        %1647 = vmatprep.subr.mxu0 0.0
        %1648 = vmatpush1.msra.mxu0 0.0
        %1649 = vmatprep.subr.mxu0 0.0
        %1650 = vmatpush1.msra.mxu0 0.0
        %1651 = vmatprep.subr.mxu0 0.0
        %1652 = vmatpush1.msra.mxu0 0.0
        %1653 = vmatprep.subr.mxu0 0.0
        %1654 = vmatpush1.msra.mxu0 0.0
        %1655 = vmatprep.subr.mxu0 0.0
        %1656 = vmatpush1.msra.mxu0 0.0
        %1657 = vmatprep.subr.mxu0 0.0
        %1658 = vmatpush1.msra.mxu0 0.0
        %1659 = vmatprep.subr.mxu0 0.0
        %1660 = vmatpush1.msra.mxu0 0.0
        %1661 = vmatprep.subr.mxu0 0.0
        %1662 = vmatpush1.msra.mxu0 0.0
        %1663 = vmatprep.subr.mxu0 0.0
        %1664 = vmatpush1.msra.mxu0 0.0
        %1665 = vmatprep.subr.mxu0 0.0
        %1666 = vmatpush1.msra.mxu0 0.0
        %1667 = vmatprep.subr.mxu0 0.0
        %1668 = vmatpush1.msra.mxu0 0.0
        %1669 = vmatprep.subr.mxu0 0.0
        %1670 = vmatpush1.msra.mxu0 %v1173
        %1671 = vmatprep.subr.mxu0 0.0
        %1672 = vmatpush1.msra.mxu0 %v1172
        %1673 = vmatprep.subr.mxu0 0.0
        %1674 = vmatpush1.msra.mxu0 %v1171
        %1675 = vmatprep.subr.mxu0 0.0
        %1676 = vmatpush1.msra.mxu0 %v1170
        %1677 = vmatprep.subr.mxu0 0.0
        %1678 = vmatpush2.msra.mxu0 0.0
        %1679 = vmatprep.subr.mxu0 0.0
        %1680 = vmatpush2.msra.mxu0 0.0
        %1681 = vmatprep.subr.mxu0 0.0
        %1682 = vmatpush2.msra.mxu0 0.0
        %1683 = vmatprep.subr.mxu0 0.0
        %1684 = vmatpush2.msra.mxu0 0.0
        %1685 = vmatprep.subr.mxu0 0.0
        %1686 = vmatpush2.msra.mxu0 0.0
        %1687 = vmatprep.subr.mxu0 0.0
        %1688 = vmatpush2.msra.mxu0 0.0
        %1689 = vmatprep.subr.mxu0 0.0
        %1690 = vmatpush2.msra.mxu0 0.0
        %1691 = vmatprep.subr.mxu0 0.0
        %1692 = vmatpush2.msra.mxu0 0.0
        %1693 = vmatprep.subr.mxu0 0.0
        %1694 = vmatpush2.msra.mxu0 0.0
        %1695 = vmatprep.subr.mxu0 0.0
        %1696 = vmatpush2.msra.mxu0 0.0
        %1697 = vmatprep.subr.mxu0 0.0
        %1698 = vmatpush2.msra.mxu0 0.0
        %1699 = vmatprep.subr.mxu0 0.0
        %1700 = vmatpush2.msra.mxu0 0.0
        %1701 = vmatprep.subr.mxu0 0.0
        %1702 = vmatpush2.msra.mxu0 0.0
        %1703 = vmatprep.subr.mxu0 0.0
        %1704 = vmatpush2.msra.mxu0 0.0
        %1705 = vmatprep.subr.mxu0 0.0
        %1706 = vmatpush2.msra.mxu0 0.0
        %1707 = vmatprep.subr.mxu0 0.0
        %1708 = vmatpush2.msra.mxu0 0.0
        %1709 = vmatprep.mubr.f32.mxu0 0.0
        %1710 = vmatmul.mubr.f32.gmra.mxu0 %v1643
        %v1711 = vpop.f32.mrf.mxu0
        %v1712 = vadd.f32 0.0, %v1711
        %v1713 = vpop.f32.mrf.mxu0
        %1714 = vdwg.mxu0
        %v1715 = vlaneseq
        %v1716 = vshrl.u32 %v1715, 7
        %v1717 = vadd.s32 %v1716, 8
        %v1718 = vadd.s32 %v1716, 16
        %v1719 = vadd.s32 %v1716, 24
        %vm1720 = vcmp.lt.s32.totalorder %v1716, 25
        %vm1721 = vcmp.lt.s32.totalorder %v1717, 25
        %vm1722 = vcmp.lt.s32.totalorder %v1718, 25
        %vm1723 = vcmp.lt.s32.totalorder %v1719, 25
        %v1724 = vsel %vm1720, 1, 0
        %v1725 = vsel %vm1721, 1, 0
        %v1726 = vsel %vm1722, 1, 0
        %v1727 = vsel %vm1723, 1, 0
        %vm1728 = vcmp.eq.s32.totalorder %v1724, 1
        %vm1729 = vcmp.eq.s32.totalorder %v1725, 1
        %vm1730 = vcmp.eq.s32.totalorder %v1726, 1
        %vm1731 = vcmp.eq.s32.totalorder %v1727, 1
        %v1732 = vsel %vm1728, %v1460, -1e+30
        %v1733 = vsel %vm1729, %v1465, -1e+30
        %v1734 = vsel %vm1730, %v1470, -1e+30
        %v1735 = vsel %vm1731, %v1475, -1e+30
        %v1736 = vsel %vm1728, %v1480, -1e+30
        %v1737 = vsel %vm1729, %v1485, -1e+30
        %v1738 = vsel %vm1730, %v1490, -1e+30
        %v1739 = vsel %vm1731, %v1495, -1e+30
        %v1740 = vsel %vm1728, %v1500, -1e+30
        %v1741 = vsel %vm1729, %v1505, -1e+30
        %v1742 = vsel %vm1730, %v1510, -1e+30
        %v1743 = vsel %vm1731, %v1515, -1e+30
        %v1744 = vsel %vm1728, %v1520, -1e+30
        %v1745 = vsel %vm1729, %v1525, -1e+30
        %v1746 = vsel %vm1730, %v1530, -1e+30
        %v1747 = vsel %vm1731, %v1535, -1e+30
        %v1748 = vsel %vm1728, %v1540, -1e+30
        %v1749 = vsel %vm1729, %v1545, -1e+30
        %v1750 = vsel %vm1730, %v1550, -1e+30
        %v1751 = vsel %vm1731, %v1555, -1e+30
        %v1752 = vsel %vm1728, %v1560, -1e+30
        %v1753 = vsel %vm1729, %v1565, -1e+30
        %v1754 = vsel %vm1730, %v1570, -1e+30
        %v1755 = vsel %vm1731, %v1575, -1e+30
        %v1756 = vsel %vm1728, %v1580, -1e+30
        %v1757 = vsel %vm1729, %v1585, -1e+30
        %v1758 = vsel %vm1730, %v1590, -1e+30
        %v1759 = vsel %vm1731, %v1595, -1e+30
        %v1760 = vsel %vm1728, %v1600, -1e+30
        %v1761 = vsel %vm1729, %v1605, -1e+30
        %v1762 = vsel %vm1730, %v1610, -1e+30
        %v1763 = vsel %vm1731, %v1615, -1e+30
        %vm1764 = vcmask 31744
        %v1765 = vsel %vm1764, %v1732, -inf
        %v1766 = vsel %vm1764, %v1733, -inf
        %v1767 = vmax.f32 %v1765, %v1766
        %v1768 = vsel %vm1764, %v1734, -inf
        %v1769 = vmax.f32 %v1767, %v1768
        %v1770 = vsel %vm1764, %v1735, -inf
        %v1771 = vmax.f32 %v1769, %v1770
        %v1772 = vrot.slane %v1771, 4
        %v1773 = vmax.f32 %v1771, %v1772
        %v1774 = vrot.slane %v1773, 2
        %v1775 = vmax.f32 %v1773, %v1774
        %v1776 = vrot.slane %v1775, 1
        %v1777 = vmax.f32 %v1775, %v1776
        %v1778 = vsel %vm1764, %v1736, -inf
        %v1779 = vsel %vm1764, %v1737, -inf
        %v1780 = vmax.f32 %v1778, %v1779
        %v1781 = vsel %vm1764, %v1738, -inf
        %v1782 = vmax.f32 %v1780, %v1781
        %v1783 = vsel %vm1764, %v1739, -inf
        %v1784 = vmax.f32 %v1782, %v1783
        %v1785 = vrot.slane %v1784, 4
        %v1786 = vmax.f32 %v1784, %v1785
        %v1787 = vrot.slane %v1786, 2
        %v1788 = vmax.f32 %v1786, %v1787
        %v1789 = vrot.slane %v1788, 1
        %v1790 = vmax.f32 %v1788, %v1789
        %v1791 = vsel %vm1764, %v1740, -inf
        %v1792 = vsel %vm1764, %v1741, -inf
        %v1793 = vmax.f32 %v1791, %v1792
        %v1794 = vsel %vm1764, %v1742, -inf
        %v1795 = vmax.f32 %v1793, %v1794
        %v1796 = vsel %vm1764, %v1743, -inf
        %v1797 = vmax.f32 %v1795, %v1796
        %v1798 = vrot.slane %v1797, 4
        %v1799 = vmax.f32 %v1797, %v1798
        %v1800 = vrot.slane %v1799, 2
        %v1801 = vmax.f32 %v1799, %v1800
        %v1802 = vrot.slane %v1801, 1
        %v1803 = vmax.f32 %v1801, %v1802
        %v1804 = vsel %vm1764, %v1744, -inf
        %v1805 = vsel %vm1764, %v1745, -inf
        %v1806 = vmax.f32 %v1804, %v1805
        %v1807 = vsel %vm1764, %v1746, -inf
        %v1808 = vmax.f32 %v1806, %v1807
        %v1809 = vsel %vm1764, %v1747, -inf
        %v1810 = vmax.f32 %v1808, %v1809
        %v1811 = vrot.slane %v1810, 4
        %v1812 = vmax.f32 %v1810, %v1811
        %v1813 = vrot.slane %v1812, 2
        %v1814 = vmax.f32 %v1812, %v1813
        %v1815 = vrot.slane %v1814, 1
        %v1816 = vmax.f32 %v1814, %v1815
        %v1817 = vsel %vm1764, %v1748, -inf
        %v1818 = vsel %vm1764, %v1749, -inf
        %v1819 = vmax.f32 %v1817, %v1818
        %v1820 = vsel %vm1764, %v1750, -inf
        %v1821 = vmax.f32 %v1819, %v1820
        %v1822 = vsel %vm1764, %v1751, -inf
        %v1823 = vmax.f32 %v1821, %v1822
        %v1824 = vrot.slane %v1823, 4
        %v1825 = vmax.f32 %v1823, %v1824
        %v1826 = vrot.slane %v1825, 2
        %v1827 = vmax.f32 %v1825, %v1826
        %v1828 = vrot.slane %v1827, 1
        %v1829 = vmax.f32 %v1827, %v1828
        %v1830 = vsel %vm1764, %v1752, -inf
        %v1831 = vsel %vm1764, %v1753, -inf
        %v1832 = vmax.f32 %v1830, %v1831
        %v1833 = vsel %vm1764, %v1754, -inf
        %v1834 = vmax.f32 %v1832, %v1833
        %v1835 = vsel %vm1764, %v1755, -inf
        %v1836 = vmax.f32 %v1834, %v1835
        %v1837 = vrot.slane %v1836, 4
        %v1838 = vmax.f32 %v1836, %v1837
        %v1839 = vrot.slane %v1838, 2
        %v1840 = vmax.f32 %v1838, %v1839
        %v1841 = vrot.slane %v1840, 1
        %v1842 = vmax.f32 %v1840, %v1841
        %v1843 = vsel %vm1764, %v1756, -inf
        %v1844 = vsel %vm1764, %v1757, -inf
        %v1845 = vmax.f32 %v1843, %v1844
        %v1846 = vsel %vm1764, %v1758, -inf
        %v1847 = vmax.f32 %v1845, %v1846
        %v1848 = vsel %vm1764, %v1759, -inf
        %v1849 = vmax.f32 %v1847, %v1848
        %v1850 = vrot.slane %v1849, 4
        %v1851 = vmax.f32 %v1849, %v1850
        %v1852 = vrot.slane %v1851, 2
        %v1853 = vmax.f32 %v1851, %v1852
        %v1854 = vrot.slane %v1853, 1
        %v1855 = vmax.f32 %v1853, %v1854
        %v1856 = vsel %vm1764, %v1760, -inf
        %v1857 = vsel %vm1764, %v1761, -inf
        %v1858 = vmax.f32 %v1856, %v1857
        %v1859 = vsel %vm1764, %v1762, -inf
        %v1860 = vmax.f32 %v1858, %v1859
        %v1861 = vsel %vm1764, %v1763, -inf
        %v1862 = vmax.f32 %v1860, %v1861
        %v1863 = vrot.slane %v1862, 4
        %v1864 = vmax.f32 %v1862, %v1863
        %v1865 = vrot.slane %v1864, 2
        %v1866 = vmax.f32 %v1864, %v1865
        %v1867 = vrot.slane %v1866, 1
        %v1868 = vmax.f32 %v1866, %v1867
        %v1870 = vrot.slane %v1712, 1
        %v1871 = vrot.slane %v1712, 2
        %v1872 = vrot.slane %v1712, 3
        %v1873 = vrot.slane %v1712, 4
        %v1874 = vrot.slane %v1712, 5
        %v1875 = vrot.slane %v1712, 6
        %v1876 = vrot.slane %v1712, 7
        %v1885 = vmax.f32 %v1777, %v1712
        %v1886 = vmax.f32 %v1790, %v1870
        %v1887 = vmax.f32 %v1803, %v1871
        %v1888 = vmax.f32 %v1816, %v1872
        %v1889 = vmax.f32 %v1829, %v1873
        %v1890 = vmax.f32 %v1842, %v1874
        %v1891 = vmax.f32 %v1855, %v1875
        %v1892 = vmax.f32 %v1868, %v1876
        %v1893 = vlaneseq
        %v1894 = vshrl.u32 %v1893, 7
        %v1895 = vsub.s32 0, %v1894
        %v1896 = vrot.slane %v1885, %v1895
        %v1897 = vlaneseq
        %v1898 = vshrl.u32 %v1897, 7
        %v1899 = vsub.s32 0, %v1898
        %v1900 = vrot.slane %v1886, %v1899
        %v1901 = vlaneseq
        %v1902 = vshrl.u32 %v1901, 7
        %v1903 = vsub.s32 0, %v1902
        %v1904 = vrot.slane %v1887, %v1903
        %v1905 = vlaneseq
        %v1906 = vshrl.u32 %v1905, 7
        %v1907 = vsub.s32 0, %v1906
        %v1908 = vrot.slane %v1888, %v1907
        %v1909 = vlaneseq
        %v1910 = vshrl.u32 %v1909, 7
        %v1911 = vsub.s32 0, %v1910
        %v1912 = vrot.slane %v1889, %v1911
        %v1913 = vlaneseq
        %v1914 = vshrl.u32 %v1913, 7
        %v1915 = vsub.s32 0, %v1914
        %v1916 = vrot.slane %v1890, %v1915
        %v1917 = vlaneseq
        %v1918 = vshrl.u32 %v1917, 7
        %v1919 = vsub.s32 0, %v1918
        %v1920 = vrot.slane %v1891, %v1919
        %v1921 = vlaneseq
        %v1922 = vshrl.u32 %v1921, 7
        %v1923 = vsub.s32 0, %v1922
        %v1924 = vrot.slane %v1892, %v1923
        %v1925 = vsub.f32 %v1732, %v1896
        %v1926 = vsub.f32 %v1733, %v1896
        %v1927 = vsub.f32 %v1734, %v1896
        %v1928 = vsub.f32 %v1735, %v1896
        %v1929 = vsub.f32 %v1736, %v1900
        %v1930 = vsub.f32 %v1737, %v1900
        %v1931 = vsub.f32 %v1738, %v1900
        %v1932 = vsub.f32 %v1739, %v1900
        %v1933 = vsub.f32 %v1740, %v1904
        %v1934 = vsub.f32 %v1741, %v1904
        %v1935 = vsub.f32 %v1742, %v1904
        %v1936 = vsub.f32 %v1743, %v1904
        %v1937 = vsub.f32 %v1744, %v1908
        %v1938 = vsub.f32 %v1745, %v1908
        %v1939 = vsub.f32 %v1746, %v1908
        %v1940 = vsub.f32 %v1747, %v1908
        %v1941 = vsub.f32 %v1748, %v1912
        %v1942 = vsub.f32 %v1749, %v1912
        %v1943 = vsub.f32 %v1750, %v1912
        %v1944 = vsub.f32 %v1751, %v1912
        %v1945 = vsub.f32 %v1752, %v1916
        %v1946 = vsub.f32 %v1753, %v1916
        %v1947 = vsub.f32 %v1754, %v1916
        %v1948 = vsub.f32 %v1755, %v1916
        %v1949 = vsub.f32 %v1756, %v1920
        %v1950 = vsub.f32 %v1757, %v1920
        %v1951 = vsub.f32 %v1758, %v1920
        %v1952 = vsub.f32 %v1759, %v1920
        %v1953 = vsub.f32 %v1760, %v1924
        %v1954 = vsub.f32 %v1761, %v1924
        %v1955 = vsub.f32 %v1762, %v1924
        %v1956 = vsub.f32 %v1763, %v1924
        %v1957 = vmul.f32 %v1925, 1.442695
        %v1958 = vpow.pop %v1957
        %v1959 = vmul.f32 %v1926, 1.442695
        %v1960 = vpow.pop %v1959
        %v1961 = vmul.f32 %v1927, 1.442695
        %v1962 = vpow.pop %v1961
        %v1963 = vmul.f32 %v1928, 1.442695
        %v1964 = vpow.pop %v1963
        %v1965 = vmul.f32 %v1929, 1.442695
        %v1966 = vpow.pop %v1965
        %v1967 = vmul.f32 %v1930, 1.442695
        %v1968 = vpow.pop %v1967
        %v1969 = vmul.f32 %v1931, 1.442695
        %v1970 = vpow.pop %v1969
        %v1971 = vmul.f32 %v1932, 1.442695
        %v1972 = vpow.pop %v1971
        %v1973 = vmul.f32 %v1933, 1.442695
        %v1974 = vpow.pop %v1973
        %v1975 = vmul.f32 %v1934, 1.442695
        %v1976 = vpow.pop %v1975
        %v1977 = vmul.f32 %v1935, 1.442695
        %v1978 = vpow.pop %v1977
        %v1979 = vmul.f32 %v1936, 1.442695
        %v1980 = vpow.pop %v1979
        %v1981 = vmul.f32 %v1937, 1.442695
        %v1982 = vpow.pop %v1981
        %v1983 = vmul.f32 %v1938, 1.442695
        %v1984 = vpow.pop %v1983
        %v1985 = vmul.f32 %v1939, 1.442695
        %v1986 = vpow.pop %v1985
        %v1987 = vmul.f32 %v1940, 1.442695
        %v1988 = vpow.pop %v1987
        %v1989 = vmul.f32 %v1941, 1.442695
        %v1990 = vpow.pop %v1989
        %v1991 = vmul.f32 %v1942, 1.442695
        %v1992 = vpow.pop %v1991
        %v1993 = vmul.f32 %v1943, 1.442695
        %v1994 = vpow.pop %v1993
        %v1995 = vmul.f32 %v1944, 1.442695
        %v1996 = vpow.pop %v1995
        %v1997 = vmul.f32 %v1945, 1.442695
        %v1998 = vpow.pop %v1997
        %v1999 = vmul.f32 %v1946, 1.442695
        %v2000 = vpow.pop %v1999
        %v2001 = vmul.f32 %v1947, 1.442695
        %v2002 = vpow.pop %v2001
        %v2003 = vmul.f32 %v1948, 1.442695
        %v2004 = vpow.pop %v2003
        %v2005 = vmul.f32 %v1949, 1.442695
        %v2006 = vpow.pop %v2005
        %v2007 = vmul.f32 %v1950, 1.442695
        %v2008 = vpow.pop %v2007
        %v2009 = vmul.f32 %v1951, 1.442695
        %v2010 = vpow.pop %v2009
        %v2011 = vmul.f32 %v1952, 1.442695
        %v2012 = vpow.pop %v2011
        %v2013 = vmul.f32 %v1953, 1.442695
        %v2014 = vpow.pop %v2013
        %v2015 = vmul.f32 %v1954, 1.442695
        %v2016 = vpow.pop %v2015
        %v2017 = vmul.f32 %v1955, 1.442695
        %v2018 = vpow.pop %v2017
        %v2019 = vmul.f32 %v1956, 1.442695
        %v2020 = vpow.pop %v2019
        %v2029 = vrot.slane %v1886, 7
        %v2030 = vsel %vm1100, %v2029, %v1885
        %v2031 = vrot.slane %v1887, 6
        %v2032 = vsel %vm1102, %v2031, %v2030
        %v2033 = vrot.slane %v1888, 5
        %v2034 = vsel %vm1104, %v2033, %v2032
        %v2035 = vrot.slane %v1889, 4
        %v2036 = vsel %vm1106, %v2035, %v2034
        %v2037 = vrot.slane %v1890, 3
        %v2038 = vsel %vm1108, %v2037, %v2036
        %v2039 = vrot.slane %v1891, 2
        %v2040 = vsel %vm1110, %v2039, %v2038
        %v2041 = vrot.slane %v1892, 1
        %v2042 = vsel %vm1112, %v2041, %v2040
        %v2044 = vsub.f32 %v1712, %v2042
        %v2045 = vmul.f32 %v2044, 1.442695
        %v2046 = vpow.pop %v2045
        %v2047 = vsel %vm1764, %v1958, 0.0
        %v2048 = vsel %vm1764, %v1960, 0.0
        %v2049 = vadd.f32 %v2047, %v2048
        %v2050 = vsel %vm1764, %v1962, 0.0
        %v2051 = vadd.f32 %v2049, %v2050
        %v2052 = vsel %vm1764, %v1964, 0.0
        %v2053 = vadd.f32 %v2051, %v2052
        %v2054 = vrot.slane %v2053, 4
        %v2055 = vadd.f32 %v2053, %v2054
        %v2056 = vrot.slane %v2055, 2
        %v2057 = vadd.f32 %v2055, %v2056
        %v2058 = vrot.slane %v2057, 1
        %v2059 = vadd.f32 %v2057, %v2058
        %v2060 = vsel %vm1764, %v1966, 0.0
        %v2061 = vsel %vm1764, %v1968, 0.0
        %v2062 = vadd.f32 %v2060, %v2061
        %v2063 = vsel %vm1764, %v1970, 0.0
        %v2064 = vadd.f32 %v2062, %v2063
        %v2065 = vsel %vm1764, %v1972, 0.0
        %v2066 = vadd.f32 %v2064, %v2065
        %v2067 = vrot.slane %v2066, 4
        %v2068 = vadd.f32 %v2066, %v2067
        %v2069 = vrot.slane %v2068, 2
        %v2070 = vadd.f32 %v2068, %v2069
        %v2071 = vrot.slane %v2070, 1
        %v2072 = vadd.f32 %v2070, %v2071
        %v2073 = vsel %vm1764, %v1974, 0.0
        %v2074 = vsel %vm1764, %v1976, 0.0
        %v2075 = vadd.f32 %v2073, %v2074
        %v2076 = vsel %vm1764, %v1978, 0.0
        %v2077 = vadd.f32 %v2075, %v2076
        %v2078 = vsel %vm1764, %v1980, 0.0
        %v2079 = vadd.f32 %v2077, %v2078
        %v2080 = vrot.slane %v2079, 4
        %v2081 = vadd.f32 %v2079, %v2080
        %v2082 = vrot.slane %v2081, 2
        %v2083 = vadd.f32 %v2081, %v2082
        %v2084 = vrot.slane %v2083, 1
        %v2085 = vadd.f32 %v2083, %v2084
        %v2086 = vsel %vm1764, %v1982, 0.0
        %v2087 = vsel %vm1764, %v1984, 0.0
        %v2088 = vadd.f32 %v2086, %v2087
        %v2089 = vsel %vm1764, %v1986, 0.0
        %v2090 = vadd.f32 %v2088, %v2089
        %v2091 = vsel %vm1764, %v1988, 0.0
        %v2092 = vadd.f32 %v2090, %v2091
        %v2093 = vrot.slane %v2092, 4
        %v2094 = vadd.f32 %v2092, %v2093
        %v2095 = vrot.slane %v2094, 2
        %v2096 = vadd.f32 %v2094, %v2095
        %v2097 = vrot.slane %v2096, 1
        %v2098 = vadd.f32 %v2096, %v2097
        %v2099 = vsel %vm1764, %v1990, 0.0
        %v2100 = vsel %vm1764, %v1992, 0.0
        %v2101 = vadd.f32 %v2099, %v2100
        %v2102 = vsel %vm1764, %v1994, 0.0
        %v2103 = vadd.f32 %v2101, %v2102
        %v2104 = vsel %vm1764, %v1996, 0.0
        %v2105 = vadd.f32 %v2103, %v2104
        %v2106 = vrot.slane %v2105, 4
        %v2107 = vadd.f32 %v2105, %v2106
        %v2108 = vrot.slane %v2107, 2
        %v2109 = vadd.f32 %v2107, %v2108
        %v2110 = vrot.slane %v2109, 1
        %v2111 = vadd.f32 %v2109, %v2110
        %v2112 = vsel %vm1764, %v1998, 0.0
        %v2113 = vsel %vm1764, %v2000, 0.0
        %v2114 = vadd.f32 %v2112, %v2113
        %v2115 = vsel %vm1764, %v2002, 0.0
        %v2116 = vadd.f32 %v2114, %v2115
        %v2117 = vsel %vm1764, %v2004, 0.0
        %v2118 = vadd.f32 %v2116, %v2117
        %v2119 = vrot.slane %v2118, 4
        %v2120 = vadd.f32 %v2118, %v2119
        %v2121 = vrot.slane %v2120, 2
        %v2122 = vadd.f32 %v2120, %v2121
        %v2123 = vrot.slane %v2122, 1
        %v2124 = vadd.f32 %v2122, %v2123
        %v2125 = vsel %vm1764, %v2006, 0.0
        %v2126 = vsel %vm1764, %v2008, 0.0
        %v2127 = vadd.f32 %v2125, %v2126
        %v2128 = vsel %vm1764, %v2010, 0.0
        %v2129 = vadd.f32 %v2127, %v2128
        %v2130 = vsel %vm1764, %v2012, 0.0
        %v2131 = vadd.f32 %v2129, %v2130
        %v2132 = vrot.slane %v2131, 4
        %v2133 = vadd.f32 %v2131, %v2132
        %v2134 = vrot.slane %v2133, 2
        %v2135 = vadd.f32 %v2133, %v2134
        %v2136 = vrot.slane %v2135, 1
        %v2137 = vadd.f32 %v2135, %v2136
        %v2138 = vsel %vm1764, %v2014, 0.0
        %v2139 = vsel %vm1764, %v2016, 0.0
        %v2140 = vadd.f32 %v2138, %v2139
        %v2141 = vsel %vm1764, %v2018, 0.0
        %v2142 = vadd.f32 %v2140, %v2141
        %v2143 = vsel %vm1764, %v2020, 0.0
        %v2144 = vadd.f32 %v2142, %v2143
        %v2145 = vrot.slane %v2144, 4
        %v2146 = vadd.f32 %v2144, %v2145
        %v2147 = vrot.slane %v2146, 2
        %v2148 = vadd.f32 %v2146, %v2147
        %v2149 = vrot.slane %v2148, 1
        %v2150 = vadd.f32 %v2148, %v2149
        %v2152 = vrot.slane %v2046, 1
        %v2153 = vrot.slane %v2046, 2
        %v2154 = vrot.slane %v2046, 3
        %v2155 = vrot.slane %v2046, 4
        %v2156 = vrot.slane %v2046, 5
        %v2157 = vrot.slane %v2046, 6
        %v2158 = vrot.slane %v2046, 7
        %v2167 = vadd.f32 %v2059, %v2046
        %v2168 = vadd.f32 %v2072, %v2152
        %v2169 = vadd.f32 %v2085, %v2153
        %v2170 = vadd.f32 %v2098, %v2154
        %v2171 = vadd.f32 %v2111, %v2155
        %v2172 = vadd.f32 %v2124, %v2156
        %v2173 = vadd.f32 %v2137, %v2157
        %v2174 = vadd.f32 %v2150, %v2158
        %v2176 = vsel %vm1764, %v1958, 0
        %v2179 = vsel %vm1764, %v1960, 0
        %v2182 = vsel %vm1764, %v1962, 0
        %v2185 = vsel %vm1764, %v1964, 0
        %v2188 = vsel %vm1764, %v1966, 0
        %v2191 = vsel %vm1764, %v1968, 0
        %v2194 = vsel %vm1764, %v1970, 0
        %v2197 = vsel %vm1764, %v1972, 0
        %v2200 = vsel %vm1764, %v1974, 0
        %v2203 = vsel %vm1764, %v1976, 0
        %v2206 = vsel %vm1764, %v1978, 0
        %v2209 = vsel %vm1764, %v1980, 0
        %v2212 = vsel %vm1764, %v1982, 0
        %v2215 = vsel %vm1764, %v1984, 0
        %v2218 = vsel %vm1764, %v1986, 0
        %v2221 = vsel %vm1764, %v1988, 0
        %v2224 = vsel %vm1764, %v1990, 0
        %v2227 = vsel %vm1764, %v1992, 0
        %v2230 = vsel %vm1764, %v1994, 0
        %v2233 = vsel %vm1764, %v1996, 0
        %v2236 = vsel %vm1764, %v1998, 0
        %v2239 = vsel %vm1764, %v2000, 0
        %v2242 = vsel %vm1764, %v2002, 0
        %v2245 = vsel %vm1764, %v2004, 0
        %v2248 = vsel %vm1764, %v2006, 0
        %v2251 = vsel %vm1764, %v2008, 0
        %v2254 = vsel %vm1764, %v2010, 0
        %v2257 = vsel %vm1764, %v2012, 0
        %v2260 = vsel %vm1764, %v2014, 0
        %v2263 = vsel %vm1764, %v2016, 0
        %v2266 = vsel %vm1764, %v2018, 0
        %v2269 = vsel %vm1764, %v2020, 0
        %vm2271 = vcmask 1043456
        %v2273 = vsel %vm2271, %v1174, 0
        %2275 = vmatprep.subr.mxu0 0.0
        %2276 = vmatpush1.msra.mxu0 0.0
        %2277 = vmatprep.subr.mxu0 0.0
        %2278 = vmatpush1.msra.mxu0 0.0
        %2279 = vmatprep.subr.mxu0 0.0
        %2280 = vmatpush1.msra.mxu0 0.0
        %2281 = vmatprep.subr.mxu0 0.0
        %2282 = vmatpush1.msra.mxu0 0.0
        %2283 = vmatprep.subr.mxu0 0.0
        %2284 = vmatpush1.msra.mxu0 0.0
        %2285 = vmatprep.subr.mxu0 0.0
        %2286 = vmatpush1.msra.mxu0 0.0
        %2287 = vmatprep.subr.mxu0 0.0
        %2288 = vmatpush1.msra.mxu0 0.0
        %2289 = vmatprep.subr.mxu0 0.0
        %2290 = vmatpush1.msra.mxu0 0.0
        %2291 = vmatprep.subr.mxu0 0.0
        %2292 = vmatpush1.msra.mxu0 0.0
        %2293 = vmatprep.subr.mxu0 0.0
        %2294 = vmatpush1.msra.mxu0 0.0
        %2295 = vmatprep.subr.mxu0 0.0
        %2296 = vmatpush1.msra.mxu0 0.0
        %2297 = vmatprep.subr.mxu0 0.0
        %2298 = vmatpush1.msra.mxu0 0.0
        %2299 = vmatprep.subr.mxu0 0.0
        %2300 = vmatpush1.msra.mxu0 0.0
        %2301 = vmatprep.subr.mxu0 0.0
        %2302 = vmatpush1.msra.mxu0 0.0
        %2303 = vmatprep.subr.mxu0 0.0
        %2304 = vmatpush1.msra.mxu0 0.0
        %2305 = vmatprep.subr.mxu0 0.0
        %2306 = vmatpush1.msra.mxu0 %v2273
        %2307 = vmatprep.subr.mxu0 0.0
        %2308 = vmatpush2.msra.mxu0 0.0
        %2309 = vmatprep.subr.mxu0 0.0
        %2310 = vmatpush2.msra.mxu0 0.0
        %2311 = vmatprep.subr.mxu0 0.0
        %2312 = vmatpush2.msra.mxu0 0.0
        %2313 = vmatprep.subr.mxu0 0.0
        %2314 = vmatpush2.msra.mxu0 0.0
        %2315 = vmatprep.subr.mxu0 0.0
        %2316 = vmatpush2.msra.mxu0 0.0
        %2317 = vmatprep.subr.mxu0 0.0
        %2318 = vmatpush2.msra.mxu0 0.0
        %2319 = vmatprep.subr.mxu0 0.0
        %2320 = vmatpush2.msra.mxu0 0.0
        %2321 = vmatprep.subr.mxu0 0.0
        %2322 = vmatpush2.msra.mxu0 0.0
        %2323 = vmatprep.subr.mxu0 0.0
        %2324 = vmatpush2.msra.mxu0 0.0
        %2325 = vmatprep.subr.mxu0 0.0
        %2326 = vmatpush2.msra.mxu0 0.0
        %2327 = vmatprep.subr.mxu0 0.0
        %2328 = vmatpush2.msra.mxu0 0.0
        %2329 = vmatprep.subr.mxu0 0.0
        %2330 = vmatpush2.msra.mxu0 0.0
        %2331 = vmatprep.subr.mxu0 0.0
        %2332 = vmatpush2.msra.mxu0 0.0
        %2333 = vmatprep.subr.mxu0 0.0
        %2334 = vmatpush2.msra.mxu0 0.0
        %2335 = vmatprep.subr.mxu0 0.0
        %2336 = vmatpush2.msra.mxu0 0.0
        %2337 = vmatprep.subr.mxu0 0.0
        %2338 = vmatpush2.msra.mxu0 0.0
        %2339 = vmatprep.mubr.f32.mxu0 0.0
        %2340 = vmatmul.mubr.f32.gmra.mxu0 %v2176
        %v2341 = vpop.f32.mrf.mxu0
        %v2342 = vadd.f32 0.0, %v2341
        %v2343 = vpop.f32.mrf.mxu0
        %2344 = vmatprep.mubr.f32.mxu0 0.0
        %2345 = vmatmul.mubr.f32.gmra.mxu0 %v2179
        %v2346 = vpop.f32.mrf.mxu0
        %v2347 = vadd.f32 0.0, %v2346
        %v2348 = vpop.f32.mrf.mxu0
        %2349 = vmatprep.mubr.f32.mxu0 0.0
        %2350 = vmatmul.mubr.f32.gmra.mxu0 %v2182
        %v2351 = vpop.f32.mrf.mxu0
        %v2352 = vadd.f32 0.0, %v2351
        %v2353 = vpop.f32.mrf.mxu0
        %2354 = vmatprep.mubr.f32.mxu0 0.0
        %2355 = vmatmul.mubr.f32.gmra.mxu0 %v2185
        %v2356 = vpop.f32.mrf.mxu0
        %v2357 = vadd.f32 0.0, %v2356
        %v2358 = vpop.f32.mrf.mxu0
        %2359 = vmatprep.mubr.f32.mxu0 0.0
        %2360 = vmatmul.mubr.f32.gmra.mxu0 %v2188
        %v2361 = vpop.f32.mrf.mxu0
        %v2362 = vadd.f32 0.0, %v2361
        %v2363 = vpop.f32.mrf.mxu0
        %2364 = vmatprep.mubr.f32.mxu0 0.0
        %2365 = vmatmul.mubr.f32.gmra.mxu0 %v2191
        %v2366 = vpop.f32.mrf.mxu0
        %v2367 = vadd.f32 0.0, %v2366
        %v2368 = vpop.f32.mrf.mxu0
        %2369 = vmatprep.mubr.f32.mxu0 0.0
        %2370 = vmatmul.mubr.f32.gmra.mxu0 %v2194
        %v2371 = vpop.f32.mrf.mxu0
        %v2372 = vadd.f32 0.0, %v2371
        %v2373 = vpop.f32.mrf.mxu0
        %2374 = vmatprep.mubr.f32.mxu0 0.0
        %2375 = vmatmul.mubr.f32.gmra.mxu0 %v2197
        %v2376 = vpop.f32.mrf.mxu0
        %v2377 = vadd.f32 0.0, %v2376
        %v2378 = vpop.f32.mrf.mxu0
        %2379 = vmatprep.mubr.f32.mxu0 0.0
        %2380 = vmatmul.mubr.f32.gmra.mxu0 %v2200
        %v2381 = vpop.f32.mrf.mxu0
        %v2382 = vadd.f32 0.0, %v2381
        %v2383 = vpop.f32.mrf.mxu0
        %2384 = vmatprep.mubr.f32.mxu0 0.0
        %2385 = vmatmul.mubr.f32.gmra.mxu0 %v2203
        %v2386 = vpop.f32.mrf.mxu0
        %v2387 = vadd.f32 0.0, %v2386
        %v2388 = vpop.f32.mrf.mxu0
        %2389 = vmatprep.mubr.f32.mxu0 0.0
        %2390 = vmatmul.mubr.f32.gmra.mxu0 %v2206
        %v2391 = vpop.f32.mrf.mxu0
        %v2392 = vadd.f32 0.0, %v2391
        %v2393 = vpop.f32.mrf.mxu0
        %2394 = vmatprep.mubr.f32.mxu0 0.0
        %2395 = vmatmul.mubr.f32.gmra.mxu0 %v2209
        %v2396 = vpop.f32.mrf.mxu0
        %v2397 = vadd.f32 0.0, %v2396
        %v2398 = vpop.f32.mrf.mxu0
        %2399 = vmatprep.mubr.f32.mxu0 0.0
        %2400 = vmatmul.mubr.f32.gmra.mxu0 %v2212
        %v2401 = vpop.f32.mrf.mxu0
        %v2402 = vadd.f32 0.0, %v2401
        %v2403 = vpop.f32.mrf.mxu0
        %2404 = vmatprep.mubr.f32.mxu0 0.0
        %2405 = vmatmul.mubr.f32.gmra.mxu0 %v2215
        %v2406 = vpop.f32.mrf.mxu0
        %v2407 = vadd.f32 0.0, %v2406
        %v2408 = vpop.f32.mrf.mxu0
        %2409 = vmatprep.mubr.f32.mxu0 0.0
        %2410 = vmatmul.mubr.f32.gmra.mxu0 %v2218
        %v2411 = vpop.f32.mrf.mxu0
        %v2412 = vadd.f32 0.0, %v2411
        %v2413 = vpop.f32.mrf.mxu0
        %2414 = vmatprep.mubr.f32.mxu0 0.0
        %2415 = vmatmul.mubr.f32.gmra.mxu0 %v2221
        %v2416 = vpop.f32.mrf.mxu0
        %v2417 = vadd.f32 0.0, %v2416
        %v2418 = vpop.f32.mrf.mxu0
        %2419 = vmatprep.mubr.f32.mxu0 0.0
        %2420 = vmatmul.mubr.f32.gmra.mxu0 %v2224
        %v2421 = vpop.f32.mrf.mxu0
        %v2422 = vadd.f32 0.0, %v2421
        %v2423 = vpop.f32.mrf.mxu0
        %2424 = vmatprep.mubr.f32.mxu0 0.0
        %2425 = vmatmul.mubr.f32.gmra.mxu0 %v2227
        %v2426 = vpop.f32.mrf.mxu0
        %v2427 = vadd.f32 0.0, %v2426
        %v2428 = vpop.f32.mrf.mxu0
        %2429 = vmatprep.mubr.f32.mxu0 0.0
        %2430 = vmatmul.mubr.f32.gmra.mxu0 %v2230
        %v2431 = vpop.f32.mrf.mxu0
        %v2432 = vadd.f32 0.0, %v2431
        %v2433 = vpop.f32.mrf.mxu0
        %2434 = vmatprep.mubr.f32.mxu0 0.0
        %2435 = vmatmul.mubr.f32.gmra.mxu0 %v2233
        %v2436 = vpop.f32.mrf.mxu0
        %v2437 = vadd.f32 0.0, %v2436
        %v2438 = vpop.f32.mrf.mxu0
        %2439 = vmatprep.mubr.f32.mxu0 0.0
        %2440 = vmatmul.mubr.f32.gmra.mxu0 %v2236
        %v2441 = vpop.f32.mrf.mxu0
        %v2442 = vadd.f32 0.0, %v2441
        %v2443 = vpop.f32.mrf.mxu0
        %2444 = vmatprep.mubr.f32.mxu0 0.0
        %2445 = vmatmul.mubr.f32.gmra.mxu0 %v2239
        %v2446 = vpop.f32.mrf.mxu0
        %v2447 = vadd.f32 0.0, %v2446
        %v2448 = vpop.f32.mrf.mxu0
        %2449 = vmatprep.mubr.f32.mxu0 0.0
        %2450 = vmatmul.mubr.f32.gmra.mxu0 %v2242
        %v2451 = vpop.f32.mrf.mxu0
        %v2452 = vadd.f32 0.0, %v2451
        %v2453 = vpop.f32.mrf.mxu0
        %2454 = vmatprep.mubr.f32.mxu0 0.0
        %2455 = vmatmul.mubr.f32.gmra.mxu0 %v2245
        %v2456 = vpop.f32.mrf.mxu0
        %v2457 = vadd.f32 0.0, %v2456
        %v2458 = vpop.f32.mrf.mxu0
        %2459 = vmatprep.mubr.f32.mxu0 0.0
        %2460 = vmatmul.mubr.f32.gmra.mxu0 %v2248
        %v2461 = vpop.f32.mrf.mxu0
        %v2462 = vadd.f32 0.0, %v2461
        %v2463 = vpop.f32.mrf.mxu0
        %2464 = vmatprep.mubr.f32.mxu0 0.0
        %2465 = vmatmul.mubr.f32.gmra.mxu0 %v2251
        %v2466 = vpop.f32.mrf.mxu0
        %v2467 = vadd.f32 0.0, %v2466
        %v2468 = vpop.f32.mrf.mxu0
        %2469 = vmatprep.mubr.f32.mxu0 0.0
        %2470 = vmatmul.mubr.f32.gmra.mxu0 %v2254
        %v2471 = vpop.f32.mrf.mxu0
        %v2472 = vadd.f32 0.0, %v2471
        %v2473 = vpop.f32.mrf.mxu0
        %2474 = vmatprep.mubr.f32.mxu0 0.0
        %2475 = vmatmul.mubr.f32.gmra.mxu0 %v2257
        %v2476 = vpop.f32.mrf.mxu0
        %v2477 = vadd.f32 0.0, %v2476
        %v2478 = vpop.f32.mrf.mxu0
        %2479 = vmatprep.mubr.f32.mxu0 0.0
        %2480 = vmatmul.mubr.f32.gmra.mxu0 %v2260
        %v2481 = vpop.f32.mrf.mxu0
        %v2482 = vadd.f32 0.0, %v2481
        %v2483 = vpop.f32.mrf.mxu0
        %2484 = vmatprep.mubr.f32.mxu0 0.0
        %2485 = vmatmul.mubr.f32.gmra.mxu0 %v2263
        %v2486 = vpop.f32.mrf.mxu0
        %v2487 = vadd.f32 0.0, %v2486
        %v2488 = vpop.f32.mrf.mxu0
        %2489 = vmatprep.mubr.f32.mxu0 0.0
        %2490 = vmatmul.mubr.f32.gmra.mxu0 %v2266
        %v2491 = vpop.f32.mrf.mxu0
        %v2492 = vadd.f32 0.0, %v2491
        %v2493 = vpop.f32.mrf.mxu0
        %2494 = vmatprep.mubr.f32.mxu0 0.0
        %2495 = vmatmul.mubr.f32.gmra.mxu0 %v2269
        %v2496 = vpop.f32.mrf.mxu0
        %v2497 = vadd.f32 0.0, %v2496
        %v2498 = vpop.f32.mrf.mxu0
        %2499 = vdwg.mxu0
        %2532 = vrot.lane.b32.xlu0 %v1033, 96
        %v2533 = vpop.permute.xlu0 %2532
        %2534 = vrot.lane.b32.xlu0 %v1034, 96
        %v2535 = vpop.permute.xlu0 %2534
        %2536 = vrot.lane.b32.xlu0 %v1035, 96
        %v2537 = vpop.permute.xlu0 %2536
        %2538 = vrot.lane.b32.xlu0 %v1036, 96
        %v2539 = vpop.permute.xlu0 %2538
        %2540 = vrot.lane.b32.xlu0 %v1037, 96
        %v2541 = vpop.permute.xlu0 %2540
        %2542 = vrot.lane.b32.xlu0 %v1038, 96
        %v2543 = vpop.permute.xlu0 %2542
        %2544 = vrot.lane.b32.xlu0 %v1039, 96
        %v2545 = vpop.permute.xlu0 %2544
        %2546 = vrot.lane.b32.xlu0 %v1040, 96
        %v2547 = vpop.permute.xlu0 %2546
        %2548 = vrot.lane.b32.xlu0 %v1041, 96
        %v2549 = vpop.permute.xlu0 %2548
        %2550 = vrot.lane.b32.xlu0 %v1042, 96
        %v2551 = vpop.permute.xlu0 %2550
        %2552 = vrot.lane.b32.xlu0 %v1043, 96
        %v2553 = vpop.permute.xlu0 %2552
        %2554 = vrot.lane.b32.xlu0 %v1044, 96
        %v2555 = vpop.permute.xlu0 %2554
        %2556 = vrot.lane.b32.xlu0 %v1045, 96
        %v2557 = vpop.permute.xlu0 %2556
        %2558 = vrot.lane.b32.xlu0 %v1046, 96
        %v2559 = vpop.permute.xlu0 %2558
        %2560 = vrot.lane.b32.xlu0 %v1047, 96
        %v2561 = vpop.permute.xlu0 %2560
        %2562 = vrot.lane.b32.xlu0 %v1048, 96
        %v2563 = vpop.permute.xlu0 %2562
        %2564 = vrot.lane.b32.xlu0 %v1049, 96
        %v2565 = vpop.permute.xlu0 %2564
        %2566 = vrot.lane.b32.xlu0 %v1050, 96
        %v2567 = vpop.permute.xlu0 %2566
        %2568 = vrot.lane.b32.xlu0 %v1051, 96
        %v2569 = vpop.permute.xlu0 %2568
        %2570 = vrot.lane.b32.xlu0 %v1052, 96
        %v2571 = vpop.permute.xlu0 %2570
        %2572 = vrot.lane.b32.xlu0 %v1053, 96
        %v2573 = vpop.permute.xlu0 %2572
        %2574 = vrot.lane.b32.xlu0 %v1054, 96
        %v2575 = vpop.permute.xlu0 %2574
        %2576 = vrot.lane.b32.xlu0 %v1055, 96
        %v2577 = vpop.permute.xlu0 %2576
        %2578 = vrot.lane.b32.xlu0 %v1056, 96
        %v2579 = vpop.permute.xlu0 %2578
        %2580 = vrot.lane.b32.xlu0 %v1057, 96
        %v2581 = vpop.permute.xlu0 %2580
        %2582 = vrot.lane.b32.xlu0 %v1058, 96
        %v2583 = vpop.permute.xlu0 %2582
        %2584 = vrot.lane.b32.xlu0 %v1059, 96
        %v2585 = vpop.permute.xlu0 %2584
        %2586 = vrot.lane.b32.xlu0 %v1060, 96
        %v2587 = vpop.permute.xlu0 %2586
        %2588 = vrot.lane.b32.xlu0 %v1061, 96
        %v2589 = vpop.permute.xlu0 %2588
        %2590 = vrot.lane.b32.xlu0 %v1062, 96
        %v2591 = vpop.permute.xlu0 %2590
        %2592 = vrot.lane.b32.xlu0 %v1063, 96
        %v2593 = vpop.permute.xlu0 %2592
        %2594 = vrot.lane.b32.xlu0 %v1064, 96
        %v2595 = vpop.permute.xlu0 %2594
        %v2628 = vmul.f32 %v2342, %v2533
        %v2629 = vmul.f32 %v2347, %v2535
        %v2630 = vmul.f32 %v2352, %v2537
        %v2631 = vmul.f32 %v2357, %v2539
        %v2632 = vmul.f32 %v2362, %v2541
        %v2633 = vmul.f32 %v2367, %v2543
        %v2634 = vmul.f32 %v2372, %v2545
        %v2635 = vmul.f32 %v2377, %v2547
        %v2636 = vmul.f32 %v2382, %v2549
        %v2637 = vmul.f32 %v2387, %v2551
        %v2638 = vmul.f32 %v2392, %v2553
        %v2639 = vmul.f32 %v2397, %v2555
        %v2640 = vmul.f32 %v2402, %v2557
        %v2641 = vmul.f32 %v2407, %v2559
        %v2642 = vmul.f32 %v2412, %v2561
        %v2643 = vmul.f32 %v2417, %v2563
        %v2644 = vmul.f32 %v2422, %v2565
        %v2645 = vmul.f32 %v2427, %v2567
        %v2646 = vmul.f32 %v2432, %v2569
        %v2647 = vmul.f32 %v2437, %v2571
        %v2648 = vmul.f32 %v2442, %v2573
        %v2649 = vmul.f32 %v2447, %v2575
        %v2650 = vmul.f32 %v2452, %v2577
        %v2651 = vmul.f32 %v2457, %v2579
        %v2652 = vmul.f32 %v2462, %v2581
        %v2653 = vmul.f32 %v2467, %v2583
        %v2654 = vmul.f32 %v2472, %v2585
        %v2655 = vmul.f32 %v2477, %v2587
        %v2656 = vmul.f32 %v2482, %v2589
        %v2657 = vmul.f32 %v2487, %v2591
        %v2658 = vmul.f32 %v2492, %v2593
        %v2659 = vmul.f32 %v2497, %v2595
        %v2660 = vsel %vm547, %v2628, 0.0
        %v2661 = vsel %vm547, %v2629, 0.0
        %v2662 = vadd.f32 %v2660, %v2661
        %v2663 = vsel %vm547, %v2630, 0.0
        %v2664 = vadd.f32 %v2662, %v2663
        %v2665 = vsel %vm547, %v2631, 0.0
        %v2666 = vadd.f32 %v2664, %v2665
        %v2667 = vrot.slane %v2666, 4
        %v2668 = vadd.f32 %v2666, %v2667
        %v2669 = vrot.slane %v2668, 2
        %v2670 = vadd.f32 %v2668, %v2669
        %v2671 = vrot.slane %v2670, 1
        %v2672 = vadd.f32 %v2670, %v2671
        %v2673 = vsel %vm547, %v2632, 0.0
        %v2674 = vsel %vm547, %v2633, 0.0
        %v2675 = vadd.f32 %v2673, %v2674
        %v2676 = vsel %vm547, %v2634, 0.0
        %v2677 = vadd.f32 %v2675, %v2676
        %v2678 = vsel %vm547, %v2635, 0.0
        %v2679 = vadd.f32 %v2677, %v2678
        %v2680 = vrot.slane %v2679, 4
        %v2681 = vadd.f32 %v2679, %v2680
        %v2682 = vrot.slane %v2681, 2
        %v2683 = vadd.f32 %v2681, %v2682
        %v2684 = vrot.slane %v2683, 1
        %v2685 = vadd.f32 %v2683, %v2684
        %v2686 = vsel %vm547, %v2636, 0.0
        %v2687 = vsel %vm547, %v2637, 0.0
        %v2688 = vadd.f32 %v2686, %v2687
        %v2689 = vsel %vm547, %v2638, 0.0
        %v2690 = vadd.f32 %v2688, %v2689
        %v2691 = vsel %vm547, %v2639, 0.0
        %v2692 = vadd.f32 %v2690, %v2691
        %v2693 = vrot.slane %v2692, 4
        %v2694 = vadd.f32 %v2692, %v2693
        %v2695 = vrot.slane %v2694, 2
        %v2696 = vadd.f32 %v2694, %v2695
        %v2697 = vrot.slane %v2696, 1
        %v2698 = vadd.f32 %v2696, %v2697
        %v2699 = vsel %vm547, %v2640, 0.0
        %v2700 = vsel %vm547, %v2641, 0.0
        %v2701 = vadd.f32 %v2699, %v2700
        %v2702 = vsel %vm547, %v2642, 0.0
        %v2703 = vadd.f32 %v2701, %v2702
        %v2704 = vsel %vm547, %v2643, 0.0
        %v2705 = vadd.f32 %v2703, %v2704
        %v2706 = vrot.slane %v2705, 4
        %v2707 = vadd.f32 %v2705, %v2706
        %v2708 = vrot.slane %v2707, 2
        %v2709 = vadd.f32 %v2707, %v2708
        %v2710 = vrot.slane %v2709, 1
        %v2711 = vadd.f32 %v2709, %v2710
        %v2712 = vsel %vm547, %v2644, 0.0
        %v2713 = vsel %vm547, %v2645, 0.0
        %v2714 = vadd.f32 %v2712, %v2713
        %v2715 = vsel %vm547, %v2646, 0.0
        %v2716 = vadd.f32 %v2714, %v2715
        %v2717 = vsel %vm547, %v2647, 0.0
        %v2718 = vadd.f32 %v2716, %v2717
        %v2719 = vrot.slane %v2718, 4
        %v2720 = vadd.f32 %v2718, %v2719
        %v2721 = vrot.slane %v2720, 2
        %v2722 = vadd.f32 %v2720, %v2721
        %v2723 = vrot.slane %v2722, 1
        %v2724 = vadd.f32 %v2722, %v2723
        %v2725 = vsel %vm547, %v2648, 0.0
        %v2726 = vsel %vm547, %v2649, 0.0
        %v2727 = vadd.f32 %v2725, %v2726
        %v2728 = vsel %vm547, %v2650, 0.0
        %v2729 = vadd.f32 %v2727, %v2728
        %v2730 = vsel %vm547, %v2651, 0.0
        %v2731 = vadd.f32 %v2729, %v2730
        %v2732 = vrot.slane %v2731, 4
        %v2733 = vadd.f32 %v2731, %v2732
        %v2734 = vrot.slane %v2733, 2
        %v2735 = vadd.f32 %v2733, %v2734
        %v2736 = vrot.slane %v2735, 1
        %v2737 = vadd.f32 %v2735, %v2736
        %v2738 = vsel %vm547, %v2652, 0.0
        %v2739 = vsel %vm547, %v2653, 0.0
        %v2740 = vadd.f32 %v2738, %v2739
        %v2741 = vsel %vm547, %v2654, 0.0
        %v2742 = vadd.f32 %v2740, %v2741
        %v2743 = vsel %vm547, %v2655, 0.0
        %v2744 = vadd.f32 %v2742, %v2743
        %v2745 = vrot.slane %v2744, 4
        %v2746 = vadd.f32 %v2744, %v2745
        %v2747 = vrot.slane %v2746, 2
        %v2748 = vadd.f32 %v2746, %v2747
        %v2749 = vrot.slane %v2748, 1
        %v2750 = vadd.f32 %v2748, %v2749
        %v2751 = vsel %vm547, %v2656, 0.0
        %v2752 = vsel %vm547, %v2657, 0.0
        %v2753 = vadd.f32 %v2751, %v2752
        %v2754 = vsel %vm547, %v2658, 0.0
        %v2755 = vadd.f32 %v2753, %v2754
        %v2756 = vsel %vm547, %v2659, 0.0
        %v2757 = vadd.f32 %v2755, %v2756
        %v2758 = vrot.slane %v2757, 4
        %v2759 = vadd.f32 %v2757, %v2758
        %v2760 = vrot.slane %v2759, 2
        %v2761 = vadd.f32 %v2759, %v2760
        %v2762 = vrot.slane %v2761, 1
        %v2763 = vadd.f32 %v2761, %v2762
        %v2764 = vsel %vm1764, %v2046, 0
        %2766 = vmatprep.subr.mxu0 0.0
        %2767 = vmatpush1.msra.mxu0 0.0
        %2768 = vmatprep.subr.mxu0 0.0
        %2769 = vmatpush1.msra.mxu0 0.0
        %2770 = vmatprep.subr.mxu0 0.0
        %2771 = vmatpush1.msra.mxu0 0.0
        %2772 = vmatprep.subr.mxu0 0.0
        %2773 = vmatpush1.msra.mxu0 0.0
        %2774 = vmatprep.subr.mxu0 0.0
        %2775 = vmatpush1.msra.mxu0 0.0
        %2776 = vmatprep.subr.mxu0 0.0
        %2777 = vmatpush1.msra.mxu0 0.0
        %2778 = vmatprep.subr.mxu0 0.0
        %2779 = vmatpush1.msra.mxu0 0.0
        %2780 = vmatprep.subr.mxu0 0.0
        %2781 = vmatpush1.msra.mxu0 0.0
        %2782 = vmatprep.subr.mxu0 0.0
        %2783 = vmatpush1.msra.mxu0 0.0
        %2784 = vmatprep.subr.mxu0 0.0
        %2785 = vmatpush1.msra.mxu0 0.0
        %2786 = vmatprep.subr.mxu0 0.0
        %2787 = vmatpush1.msra.mxu0 0.0
        %2788 = vmatprep.subr.mxu0 0.0
        %2789 = vmatpush1.msra.mxu0 0.0
        %2790 = vmatprep.subr.mxu0 0.0
        %2791 = vmatpush1.msra.mxu0 0.0
        %2792 = vmatprep.subr.mxu0 0.0
        %2793 = vmatpush1.msra.mxu0 0.0
        %2794 = vmatprep.subr.mxu0 0.0
        %2795 = vmatpush1.msra.mxu0 0.0
        %2796 = vmatprep.subr.mxu0 0.0
        %2797 = vmatpush1.msra.mxu0 %v2273
        %2798 = vmatprep.subr.mxu0 0.0
        %2799 = vmatpush2.msra.mxu0 0.0
        %2800 = vmatprep.subr.mxu0 0.0
        %2801 = vmatpush2.msra.mxu0 0.0
        %2802 = vmatprep.subr.mxu0 0.0
        %2803 = vmatpush2.msra.mxu0 0.0
        %2804 = vmatprep.subr.mxu0 0.0
        %2805 = vmatpush2.msra.mxu0 0.0
        %2806 = vmatprep.subr.mxu0 0.0
        %2807 = vmatpush2.msra.mxu0 0.0
        %2808 = vmatprep.subr.mxu0 0.0
        %2809 = vmatpush2.msra.mxu0 0.0
        %2810 = vmatprep.subr.mxu0 0.0
        %2811 = vmatpush2.msra.mxu0 0.0
        %2812 = vmatprep.subr.mxu0 0.0
        %2813 = vmatpush2.msra.mxu0 0.0
        %2814 = vmatprep.subr.mxu0 0.0
        %2815 = vmatpush2.msra.mxu0 0.0
        %2816 = vmatprep.subr.mxu0 0.0
        %2817 = vmatpush2.msra.mxu0 0.0
        %2818 = vmatprep.subr.mxu0 0.0
        %2819 = vmatpush2.msra.mxu0 0.0
        %2820 = vmatprep.subr.mxu0 0.0
        %2821 = vmatpush2.msra.mxu0 0.0
        %2822 = vmatprep.subr.mxu0 0.0
        %2823 = vmatpush2.msra.mxu0 0.0
        %2824 = vmatprep.subr.mxu0 0.0
        %2825 = vmatpush2.msra.mxu0 0.0
        %2826 = vmatprep.subr.mxu0 0.0
        %2827 = vmatpush2.msra.mxu0 0.0
        %2828 = vmatprep.subr.mxu0 0.0
        %2829 = vmatpush2.msra.mxu0 0.0
        %2830 = vmatprep.mubr.f32.mxu0 0.0
        %2831 = vmatmul.mubr.f32.gmra.mxu0 %v2764
        %v2832 = vpop.f32.mrf.mxu0
        %v2833 = vadd.f32 0.0, %v2832
        %v2834 = vpop.f32.mrf.mxu0
        %2835 = vdwg.mxu0
        %2836 = vrot.lane.b32.xlu0 %v1639, 96
        %v2837 = vpop.permute.xlu0 %2836
        %v2839 = vmul.f32 %v2833, %v2837
        %v2841 = vrot.slane %v2839, 1
        %v2842 = vrot.slane %v2839, 2
        %v2843 = vrot.slane %v2839, 3
        %v2844 = vrot.slane %v2839, 4
        %v2845 = vrot.slane %v2839, 5
        %v2846 = vrot.slane %v2839, 6
        %v2847 = vrot.slane %v2839, 7
        %v2856 = vadd.f32 %v2672, %v2839
        %v2857 = vadd.f32 %v2685, %v2841
        %v2858 = vadd.f32 %v2698, %v2842
        %v2859 = vadd.f32 %v2711, %v2843
        %v2860 = vadd.f32 %v2724, %v2844
        %v2861 = vadd.f32 %v2737, %v2845
        %v2862 = vadd.f32 %v2750, %v2846
        %v2863 = vadd.f32 %v2763, %v2847
        %v2864 = vrcp.pop %v2167
        %v2865 = vrcp.pop %v2168
        %v2866 = vrcp.pop %v2169
        %v2867 = vrcp.pop %v2170
        %v2868 = vrcp.pop %v2171
        %v2869 = vrcp.pop %v2172
        %v2870 = vrcp.pop %v2173
        %v2871 = vrcp.pop %v2174
        %v2880 = vrot.slane %v2865, 7
        %v2881 = vsel %vm1100, %v2880, %v2864
        %v2882 = vrot.slane %v2866, 6
        %v2883 = vsel %vm1102, %v2882, %v2881
        %v2884 = vrot.slane %v2867, 5
        %v2885 = vsel %vm1104, %v2884, %v2883
        %v2886 = vrot.slane %v2868, 4
        %v2887 = vsel %vm1106, %v2886, %v2885
        %v2888 = vrot.slane %v2869, 3
        %v2889 = vsel %vm1108, %v2888, %v2887
        %v2890 = vrot.slane %v2870, 2
        %v2891 = vsel %vm1110, %v2890, %v2889
        %v2892 = vrot.slane %v2871, 1
        %v2893 = vsel %vm1112, %v2892, %v2891
        %v2894 = vsel %vm1764, %v2893, 0
        %2896 = vmatprep.subr.mxu0 0.0
        %2897 = vmatpush1.msra.mxu0 0.0
        %2898 = vmatprep.subr.mxu0 0.0
        %2899 = vmatpush1.msra.mxu0 0.0
        %2900 = vmatprep.subr.mxu0 0.0
        %2901 = vmatpush1.msra.mxu0 0.0
        %2902 = vmatprep.subr.mxu0 0.0
        %2903 = vmatpush1.msra.mxu0 0.0
        %2904 = vmatprep.subr.mxu0 0.0
        %2905 = vmatpush1.msra.mxu0 0.0
        %2906 = vmatprep.subr.mxu0 0.0
        %2907 = vmatpush1.msra.mxu0 0.0
        %2908 = vmatprep.subr.mxu0 0.0
        %2909 = vmatpush1.msra.mxu0 0.0
        %2910 = vmatprep.subr.mxu0 0.0
        %2911 = vmatpush1.msra.mxu0 0.0
        %2912 = vmatprep.subr.mxu0 0.0
        %2913 = vmatpush1.msra.mxu0 0.0
        %2914 = vmatprep.subr.mxu0 0.0
        %2915 = vmatpush1.msra.mxu0 0.0
        %2916 = vmatprep.subr.mxu0 0.0
        %2917 = vmatpush1.msra.mxu0 0.0
        %2918 = vmatprep.subr.mxu0 0.0
        %2919 = vmatpush1.msra.mxu0 0.0
        %2920 = vmatprep.subr.mxu0 0.0
        %2921 = vmatpush1.msra.mxu0 0.0
        %2922 = vmatprep.subr.mxu0 0.0
        %2923 = vmatpush1.msra.mxu0 0.0
        %2924 = vmatprep.subr.mxu0 0.0
        %2925 = vmatpush1.msra.mxu0 0.0
        %2926 = vmatprep.subr.mxu0 0.0
        %2927 = vmatpush1.msra.mxu0 %v2273
        %2928 = vmatprep.subr.mxu0 0.0
        %2929 = vmatpush2.msra.mxu0 0.0
        %2930 = vmatprep.subr.mxu0 0.0
        %2931 = vmatpush2.msra.mxu0 0.0
        %2932 = vmatprep.subr.mxu0 0.0
        %2933 = vmatpush2.msra.mxu0 0.0
        %2934 = vmatprep.subr.mxu0 0.0
        %2935 = vmatpush2.msra.mxu0 0.0
        %2936 = vmatprep.subr.mxu0 0.0
        %2937 = vmatpush2.msra.mxu0 0.0
        %2938 = vmatprep.subr.mxu0 0.0
        %2939 = vmatpush2.msra.mxu0 0.0
        %2940 = vmatprep.subr.mxu0 0.0
        %2941 = vmatpush2.msra.mxu0 0.0
        %2942 = vmatprep.subr.mxu0 0.0
        %2943 = vmatpush2.msra.mxu0 0.0
        %2944 = vmatprep.subr.mxu0 0.0
        %2945 = vmatpush2.msra.mxu0 0.0
        %2946 = vmatprep.subr.mxu0 0.0
        %2947 = vmatpush2.msra.mxu0 0.0
        %2948 = vmatprep.subr.mxu0 0.0
        %2949 = vmatpush2.msra.mxu0 0.0
        %2950 = vmatprep.subr.mxu0 0.0
        %2951 = vmatpush2.msra.mxu0 0.0
        %2952 = vmatprep.subr.mxu0 0.0
        %2953 = vmatpush2.msra.mxu0 0.0
        %2954 = vmatprep.subr.mxu0 0.0
        %2955 = vmatpush2.msra.mxu0 0.0
        %2956 = vmatprep.subr.mxu0 0.0
        %2957 = vmatpush2.msra.mxu0 0.0
        %2958 = vmatprep.subr.mxu0 0.0
        %2959 = vmatpush2.msra.mxu0 0.0
        %2960 = vmatprep.mubr.f32.mxu0 0.0
        %2961 = vmatmul.mubr.f32.gmra.mxu0 %v2894
        %v2962 = vpop.f32.mrf.mxu0
        %v2963 = vadd.f32 0.0, %v2962
        %v2964 = vpop.f32.mrf.mxu0
        %2965 = vdwg.mxu0
        %v2967 = vrot.slane %v2963, 1
        %v2968 = vrot.slane %v2963, 2
        %v2969 = vrot.slane %v2963, 3
        %v2970 = vrot.slane %v2963, 4
        %v2971 = vrot.slane %v2963, 5
        %v2972 = vrot.slane %v2963, 6
        %v2973 = vrot.slane %v2963, 7
        %v2982 = vmul.f32 %v2856, %v2963
        %v2983 = vmul.f32 %v2857, %v2967
        %v2984 = vmul.f32 %v2858, %v2968
        %v2985 = vmul.f32 %v2859, %v2969
        %v2986 = vmul.f32 %v2860, %v2970
        %v2987 = vmul.f32 %v2861, %v2971
        %v2988 = vmul.f32 %v2862, %v2972
        %v2989 = vmul.f32 %v2863, %v2973
        %v2990 = vpack.c.bf16 %v2982, %v2982
        %v2991 = vpack.c.bf16 %v2983, %v2983
        %v2992 = vpack.c.bf16 %v2984, %v2984
        %v2993 = vpack.c.bf16 %v2985, %v2985
        %v2994 = vpack.c.bf16 %v2986, %v2986
        %v2995 = vpack.c.bf16 %v2987, %v2987
        %v2996 = vpack.c.bf16 %v2988, %v2988
        %v2997 = vpack.c.bf16 %v2989, %v2989
        %v2998 = vld [vmem:[%s6] sm:$0xf]
        %v2999 = vld [vmem:[%s6 + $0x4] sm:$0xf]
        %v3000 = vld [vmem:[%s6 + $0x8] sm:$0xf]
        %v3001 = vld [vmem:[%s6 + $0xc] sm:$0xf]
        %v3002 = vld [vmem:[#allocation8] sm:$0x1]
        %v3004 = vlaneseq
        %v3005 = vshrl.u32 %v3004, 7
        %v3006 = vsub.s32 0, %v3005
        %v3007 = vrot.slane %v3002, %v3006
        %v3017 = vunpack.c.l.b16 %v2990
        %v3018 = vunpack.c.l.b16 %v2991
        %v3019 = vunpack.c.l.b16 %v2992
        %v3020 = vunpack.c.l.b16 %v2993
        %v3021 = vunpack.c.l.b16 %v2994
        %v3022 = vunpack.c.l.b16 %v2995
        %v3023 = vunpack.c.l.b16 %v2996
        %v3024 = vunpack.c.l.b16 %v2997
        %v3025 = vrot.slane %v3018, 7
        %v3026 = vsel %vm1100, %v3025, %v3017
        %v3027 = vrot.slane %v3019, 6
        %v3028 = vsel %vm1102, %v3027, %v3026
        %v3029 = vrot.slane %v3020, 5
        %v3030 = vsel %vm1104, %v3029, %v3028
        %v3031 = vrot.slane %v3021, 4
        %v3032 = vsel %vm1106, %v3031, %v3030
        %v3033 = vrot.slane %v3022, 3
        %v3034 = vsel %vm1108, %v3033, %v3032
        %v3035 = vrot.slane %v3023, 2
        %v3036 = vsel %vm1110, %v3035, %v3034
        %v3037 = vrot.slane %v3024, 1
        %v3038 = vsel %vm1112, %v3037, %v3036
        %v3039 = vpack.c.b16 %v3038, %v3038
        %v3044 = vunpack.c.l.b16 %v2998
        %v3045 = vunpack.c.l.b16 %v2999
        %v3046 = vunpack.c.l.b16 %v3000
        %v3047 = vunpack.c.l.b16 %v3001
        %v3048 = vpack.c.b16 %v3045, %v3044
        %v3049 = vpack.c.b16 %v3047, %v3046
        %v3053 = vsel %vm547, %v3039, 0
        %3055 = vmatprep.subr.bf16.mxu0 0
        %3056 = vmatpush1.bf16.msra.mxu0 0
        %3057 = vmatprep.subr.bf16.mxu0 0
        %3058 = vmatpush1.bf16.msra.mxu0 0
        %3059 = vmatprep.subr.bf16.mxu0 0
        %3060 = vmatpush1.bf16.msra.mxu0 0
        %3061 = vmatprep.subr.bf16.mxu0 0
        %3062 = vmatpush1.bf16.msra.mxu0 0
        %3063 = vmatprep.subr.bf16.mxu0 0
        %3064 = vmatpush1.bf16.msra.mxu0 0
        %3065 = vmatprep.subr.bf16.mxu0 0
        %3066 = vmatpush1.bf16.msra.mxu0 0
        %3067 = vmatprep.subr.bf16.mxu0 0
        %3068 = vmatpush1.bf16.msra.mxu0 %v3049
        %3069 = vmatprep.subr.bf16.mxu0 0
        %3070 = vmatpush1.bf16.msra.mxu0 %v3048
        %3071 = vmatprep.subr.bf16.mxu0 0
        %3072 = vmatpush2.bf16.msra.mxu0 0
        %3073 = vmatprep.subr.bf16.mxu0 0
        %3074 = vmatpush2.bf16.msra.mxu0 0
        %3075 = vmatprep.subr.bf16.mxu0 0
        %3076 = vmatpush2.bf16.msra.mxu0 0
        %3077 = vmatprep.subr.bf16.mxu0 0
        %3078 = vmatpush2.bf16.msra.mxu0 0
        %3079 = vmatprep.subr.bf16.mxu0 0
        %3080 = vmatpush2.bf16.msra.mxu0 0
        %3081 = vmatprep.subr.bf16.mxu0 0
        %3082 = vmatpush2.bf16.msra.mxu0 0
        %3083 = vmatprep.subr.bf16.mxu0 0
        %3084 = vmatpush2.bf16.msra.mxu0 0
        %3085 = vmatprep.subr.bf16.mxu0 0
        %3086 = vmatpush2.bf16.msra.mxu0 0
        %3087 = vmatprep.mubr.bf16.mxu0 0
        %3088 = vmatmul.mubr.bf16.gmra.mxu0 %v3053
        %v3089 = vpop.f32.mrf.mxu0
        %v3090 = vadd.f32 %v3007, %v3089
        %v3091 = vpop.f32.mrf.mxu0
        %v3092 = vpop.f32.mrf.mxu0
        %v3093 = vpop.f32.mrf.mxu0
        %3094 = vdwg.mxu0
        %vm3095 = vcmask 130048
        %3096 = vst.msk [vmem:[%s416] sm:$0xff] %vm3095, %v3090
        %s3097 = sand.u32 %s252, 1
        %s3098 = scalar_lea.sflag [#allocation4], %s3097
        %s3099 = sand.u32 %s252, 1
        %s3100 = smul.addr %s3099, 8
        %s3101 = scalar_lea.vmem [#allocation10], %s3100
        // Predicated region
        $region77: #{tpu_custom_call.1} parent=59 // pred_check
          %p3102 = pneg %p262
        $region78: #{tpu_custom_call.1} parent=59 // pred_check_branch
          %3104 = sbr.rel (%p3102) target = $region80
        $region79: #{tpu_custom_call.1} parent=59 // pred_region
          %s3106 = ssub.s32 128, 128
          %3107 = vsyncadd %s3098, %s3106
          %s3108 = smul.addr %s29, 128
          %s3109 = scalar_lea.hbm %s10, %s3108
          %s3111 = sshll.u32 %s3101, 4
          %s3112 = int_to_ptr.vmem [resolvable:$true] %s3111
          %3114 = dma.vmem_to_hbm [thread:$0]  %s3112, 128, %s3109, %s3098
        $region80: #{tpu_custom_call.1} parent=59 // pred_fallthru
          _
      $region60: #{tpu_custom_call.1} parent=5 // pred_fallthru
        _
      %p3115 = scmp.le.s32.totalorder 2, %s24
      // Predicated region
      $region81: #{tpu_custom_call.1} parent=5 // pred_check
        %p3116 = pneg %p3115
      $region82: #{tpu_custom_call.1} parent=5 // pred_check_branch
        %3118 = sbr.rel (%p3116) target = $region84
      $region83: #{tpu_custom_call.1} parent=5 // pred_region
        %s3119 = ssub.s32 %s24, 2
        // Predicated region
        $region85: #{tpu_custom_call.1} parent=83 // pred_check
          %p3120 = pneg %p268
        $region86: #{tpu_custom_call.1} parent=83 // pred_check_branch
          %3122 = sbr.rel (%p3120) target = $region88
        $region87: #{tpu_custom_call.1} parent=83 // pred_region
          %s3123 = sand.u32 %s253, 1
          %s3124 = scalar_lea.sflag [#allocation4], %s3123
          %s3125 = sand.u32 %s253, 1
          %s3126 = smul.addr %s3125, 8
          %s3127 = scalar_lea.vmem [#allocation10], %s3126
          %3128 = dma.done %s3124, 128
        $region88: #{tpu_custom_call.1} parent=83 // pred_fallthru
          _
      $region84: #{tpu_custom_call.1} parent=5 // pred_fallthru
        _
    $region6: #{tpu_custom_call.1} parent=1 // loop_footer
      %s28 = sadd.s32 1, %s24
    $region7: #{tpu_custom_call.1} parent=1 // loop_footer_branch
      %23 = sbr.rel target = $region3
    $region8: #{tpu_custom_call.1} parent=1 // loop_exit
      _
    %3129 = vsyncpa [#allocation3], 1
    %s3130 = scalar_lea.sflag [#allocation3], 1
    %3131 = vsyncpa %s3130, 1
    %3132 = vsyncpa [#allocation6], 1
    %3133 = vsyncpa [#allocation9], 1
    %3134 = vsyncpa [#allocation4], 1
    %s3135 = scalar_lea.sflag [#allocation4], 1
    %3136 = vsyncpa %s3135, 1

</llo_original>
